<compile_context>
chip_gen: v7x
topology: tpu7x:2x2x1
jax: 0.10.0
libtpu: 0.0.40
codegen_flags: <defaults>
</compile_context>

<pallas_src>
import functools

import jax
import jax.numpy as jnp
from jax.experimental import pallas as pl
from jax.experimental.pallas import tpu as pltpu

EPS = 1e-6
LANE = 128
VMEM_SPEC = pl.BlockSpec(memory_space=pltpu.MemorySpace.VMEM)


# ------------------------------- kernel -------------------------------------

def _fused_forward_kernel(
    x_ref, w_qkv1_ref, w_qkv2_ref, b_qkv_ref, w_ff_ref, b_ff_ref,
    w_head_ref, b_head_ref, o_ref, *, head_num, pad_width, eps):
    DP = pad_width              # padded per-head slab width (multiple of 128)
    HDP = head_num * DP

    def normalize(v):
        # (v - mean) / (std + eps), UNBIASED std (N-1).  The LayerNorm alpha and
        # bias are folded into the NEXT weight matrix at prepare time.
        n = v.shape[-1]
        mean = jnp.mean(v, axis=-1, keepdims=True)
        d = v - mean
        var = jnp.sum(d * d, axis=-1, keepdims=True) * (1.0 / (n - 1))
        return d * pl.reciprocal(jnp.sqrt(var) + eps, approx=True)

    def attention_block(z, w_qkv, b_qkv, w_ff, b_ff):
        # One MXU dot produces Q/K/V in the expanded, 128-lane-aligned layout
        # (the 1/sqrt(D) score scale is already folded into the Q columns).
        w = jnp.dot(z, w_qkv, preferred_element_type=jnp.float32) + b_qkv
        q = w[:, :HDP]
        k = w[:, HDP:2 * HDP]
        v = w[:, 2 * HDP:]

        # scores: per-head slabs are 128-lane aligned -> plain VPU adds.
        prod = q * k
        s = prod[:, :DP]
        for h in range(1, head_num):
            s = s + prod[:, h * DP:(h + 1) * DP]

        # F.softmax with no dim on a 3-D tensor -> legacy softmax over dim 0
        # (the batch dimension).
        m = jnp.max(s, axis=0, keepdims=True)
        e = jnp.exp(s - m)
        a = e * pl.reciprocal(jnp.sum(e, axis=0, keepdims=True), approx=True)

        # A@V contraction + torch .view(B,-1) reorder + feedforward
        # linear1@linear2 are all folded into w_ff at prepare time.
        av = jnp.concatenate([a] * head_num, axis=-1) * v
        # TODO(synk): attention / feed-forward dropout are identity (eval mode).
        y = jnp.dot(av, w_ff, preferred_element_type=jnp.float32) + b_ff
        return normalize(y)

    # LayerNorm(x); its affine part is folded into w_qkv1 / b_qkv (block 1).
    z = normalize(x_ref[...])
    z = attention_block(z, w_qkv1_ref[...], b_qkv_ref[0], w_ff_ref[0], b_ff_ref[0])
    z = attention_block(z, w_qkv2_ref[...], b_qkv_ref[1], w_ff_ref[1], b_ff_ref[1])

    # classification head: (linear1 @ linear2) folded into one matrix; then
    # nn.Softmax() on a 2-D tensor -> softmax over the last dim.
    logits = (jnp.dot(z, w_head_ref[...], preferred_element_type=jnp.float32)
              + b_head_ref[...])
    m = jnp.max(logits, axis=-1, keepdims=True)
    e = jnp.exp(logits - m)
    o_ref[...] = e * pl.reciprocal(jnp.sum(e, axis=-1, keepdims=True), approx=True)


# ----------------------------- parameters ------------------------------------

def init_params(key, num_embedding, embed_dim, head_num, hidden_dim, classify_num):
    """Torch-semantics parameters: Linear weights stored as (in, out), bias (1, out)."""
    def lin(k, din, dout):
        kw, kb = jax.random.split(k)
        bound = 1.0 / jnp.sqrt(jnp.float32(din))
        w = jax.random.uniform(kw, (din, dout), jnp.float32, -bound, bound)
        b = jax.random.uniform(kb, (1, dout), jnp.float32, -bound, bound)
        return w, b

    keys = jax.random.split(key, 12)
    p = {
        "ln0_alpha": jnp.ones((1, num_embedding), jnp.float32),
        "ln0_bias": jnp.zeros((1, num_embedding), jnp.float32),
    }
    p["emb_w"], p["emb_b"] = lin(keys[0], num_embedding, embed_dim)
    for i in range(2):
        pfx = f"sa{i + 1}_"
        base = 1 + 3 * i
        p[pfx + "w_qkv"], p[pfx + "b_qkv"] = lin(keys[base], embed_dim, 3 * embed_dim)
        p[pfx + "ff_w1"], p[pfx + "ff_b1"] = lin(keys[base + 1], embed_dim, hidden_dim)
        p[pfx + "ff_w2"], p[pfx + "ff_b2"] = lin(keys[base + 2], hidden_dim, embed_dim)
        p[pfx + "ln_alpha"] = jnp.ones((1, embed_dim), jnp.float32)
        p[pfx + "ln_bias"] = jnp.zeros((1, embed_dim), jnp.float32)
    p["lin1_w"], p["lin1_b"] = lin(keys[7], embed_dim, hidden_dim)
    p["lin2_w"], p["lin2_b"] = lin(keys[8], hidden_dim, classify_num)
    return p


def prepare_params(p, head_num):
    """Fold ALL layout glue and every activation-free linear pair into the
    weights once, outside the jit (zero runtime cost).

    Expanded per-head column layout (DP = D*D rounded up to 128 lanes):
        r = h*DP + c ,  c = i*D + j  for c < D*D ; zero-padded for c >= D*D
          Q_exp[:, r] = q[:, h*D + i] / sqrt(D)
          K_exp[:, r] = k[:, h*D + j]
          V_exp[:, r] = v[:, h*D + j]
    so scores = sum_h of aligned 128-lane (Q_exp*K_exp) slabs and
    attention-out @ ff = (tile(A) * V_exp) @ (gather(ff_w1) @ ff_w2).

    Additional folds:
      * LayerNorm(x) affine + embedding Linear      -> block-1 expanded QKV
      * each block's LayerNorm affine               -> the next matmul
      * feedforward linear1 @ linear2               -> one (H*DP, E) matrix
      * classification linear1 @ linear2            -> one (E, classify_num)
    """
    E = p["emb_w"].shape[1]
    D = E // head_num
    DD = D * D
    DP = ((DD + LANE - 1) // LANE) * LANE
    HDP = head_num * DP

    r = jnp.arange(HDP)
    h_idx = r // DP
    c = r % DP
    valid = (c < DD).astype(jnp.float32)
    cc = jnp.minimum(c, DD - 1)          # clamp padded columns (masked to 0 anyway)
    i_idx = cc // D
    j_idx = cc % D
    q_src = h_idx * D + i_idx
    kv_src = h_idx * D + j_idx
    inv_sqrt_d = 1.0 / jnp.sqrt(jnp.float32(D))

    def expand_qkv(w, b):
        qw = w[:, q_src] * (valid * inv_sqrt_d)
        kw = w[:, E + kv_src] * valid
        vw = w[:, 2 * E + kv_src] * valid
        qb = b[:, q_src] * (valid * inv_sqrt_d)
        kb = b[:, E + kv_src] * valid
        vb = b[:, 2 * E + kv_src] * valid
        return (jnp.concatenate([qw, kw, vw], axis=1),
                jnp.concatenate([qb, kb, vb], axis=1))

    def fold_ff(w1, b1, w2, b2):
        # expanded row r -> torch ff_w1 row (i*head_num + h); padded rows -> 0.
        w1_eff = w1[i_idx * head_num + h_idx, :] * valid[:, None]
        return jnp.dot(w1_eff, w2), jnp.dot(b1, w2) + b2

    # block 1: LayerNorm(x) affine + embedding folded into the expanded QKV
    wq1, bq1 = expand_qkv(p["sa1_w_qkv"], p["sa1_b_qkv"])
    emb_eff = p["ln0_alpha"].reshape(-1, 1) * p["emb_w"]
    w_qkv1 = jnp.dot(emb_eff, wq1)
    b_qkv1 = jnp.dot(jnp.dot(p["ln0_bias"], p["emb_w"]) + p["emb_b"], wq1) + bq1
    w_ff1, b_ff1 = fold_ff(p["sa1_ff_w1"], p["sa1_ff_b1"],
                           p["sa1_ff_w2"], p["sa1_ff_b2"])

    # block 2: block-1 LayerNorm affine folded into the expanded QKV
    wq2, bq2 = expand_qkv(p["sa2_w_qkv"], p["sa2_b_qkv"])
    w_qkv2 = p["sa1_ln_alpha"].reshape(-1, 1) * wq2
    b_qkv2 = jnp.dot(p["sa1_ln_bias"], wq2) + bq2
    w_ff2, b_ff2 = fold_ff(p["sa2_ff_w1"], p["sa2_ff_b1"],
                           p["sa2_ff_w2"], p["sa2_ff_b2"])

    # head: block-2 LayerNorm affine + linear1 @ linear2
    w12 = jnp.dot(p["lin1_w"], p["lin2_w"])
    w_head = p["sa2_ln_alpha"].reshape(-1, 1) * w12
    b_head = (jnp.dot(p["sa2_ln_bias"], w12)
              + jnp.dot(p["lin1_b"], p["lin2_w"]) + p["lin2_b"])

    kp = {
        "w_qkv1": w_qkv1,                          # (num_embedding, 3*HDP)
        "w_qkv2": w_qkv2,                          # (E, 3*HDP)
        "b_qkv": jnp.stack([b_qkv1, b_qkv2]),      # (2, 1, 3*HDP)
        "w_ff": jnp.stack([w_ff1, w_ff2]),         # (2, HDP, E)
        "b_ff": jnp.stack([b_ff1, b_ff2]),         # (2, 1, E)
        "w_head": w_head,                          # (E, classify_num)
        "b_head": b_head,                          # (1, classify_num)
    }
    return kp, DP


# ------------------------- pure-JAX reference --------------------------------

def reference_forward(x, p, head_num):
    """Direct mirror of the PyTorch module (exact divisions, no folding)."""
    def layernorm(v, alpha, bias):
        mean = jnp.mean(v, axis=-1, keepdims=True)
        std = jnp.std(v, axis=-1, keepdims=True, ddof=1)
        return alpha * (v - mean) / (std + EPS) + bias

    def self_attention(v, pfx):
        B, E = v.shape
        D = E // head_num
        W = v @ p[pfx + "w_qkv"] + p[pfx + "b_qkv"]
        q, k, vv = W[:, :E], W[:, E:2 * E], W[:, 2 * E:]
        q = q.reshape(B, head_num, D).transpose(0, 2, 1)
        k = k.reshape(B, head_num, D).transpose(0, 2, 1)
        vv = vv.reshape(B, head_num, D).transpose(0, 2, 1)
        A = jnp.einsum("bdh,beh->bde", q, k) / jnp.sqrt(jnp.float32(D))
        A = jax.nn.softmax(A, axis=0)                  # legacy dim-0 softmax
        att = jnp.einsum("bde,beh->bdh", A, vv).reshape(B, -1)
        y = (att @ p[pfx + "ff_w1"] + p[pfx + "ff_b1"]) @ p[pfx + "ff_w2"] \
            + p[pfx + "ff_b2"]
        return layernorm(y, p[pfx + "ln_alpha"], p[pfx + "ln_bias"])

    h = layernorm(x, p["ln0_alpha"], p["ln0_bias"]) @ p["emb_w"] + p["emb_b"]
    h = self_attention(h, "sa1_")
    h = self_attention(h, "sa2_")
    logits = (h @ p["lin1_w"] + p["lin1_b"]) @ p["lin2_w"] + p["lin2_b"]
    return jax.nn.softmax(logits, axis=-1)


# ----------------------------- forward pass ----------------------------------

def nlp_classify_forward(x, kp, head_num, pad_width):
    B = x.shape[0]
    n_cls = kp["w_head"].shape[1]
    args = [x, kp["w_qkv1"], kp["w_qkv2"], kp["b_qkv"], kp["w_ff"], kp["b_ff"],
            kp["w_head"], kp["b_head"]]
    return pl.pallas_call(
        functools.partial(_fused_forward_kernel, head_num=head_num,
                          pad_width=pad_width, eps=EPS),
        out_shape=jax.ShapeDtypeStruct((B, n_cls), jnp.float32),
        in_specs=[VMEM_SPEC] * len(args),
        out_specs=VMEM_SPEC,
    )(*args)


# ----------------------------- main -------------------------------------------

if __name__ == "__main__":
    # module config (small)
    num_embedding = 32
    embed_dim = 32
    head_num = 4
    hidden_dim = 64
    classify_num = 8
    batch = 8

    key = jax.random.PRNGKey(0)
    k_params, k_x = jax.random.split(key)
    torch_params = init_params(
        k_params, num_embedding, embed_dim, head_num, hidden_dim, classify_num
    )
    kernel_params, pad_width = prepare_params(torch_params, head_num)
    kernel_params = jax.tree_util.tree_map(jax.block_until_ready, kernel_params)
    x = jax.random.normal(k_x, (batch, num_embedding), jnp.float32)

    fwd = jax.jit(functools.partial(nlp_classify_forward, head_num=head_num,
                                    pad_width=pad_width))
    out = jax.block_until_ready(fwd(x, kernel_params))

    assert out.shape == (batch, classify_num)
    assert bool(jnp.all(jnp.isfinite(out)))
    # final op is a softmax over the last dim -> rows sum to ~1 (approx recip)
    assert bool(jnp.allclose(jnp.sum(out, axis=-1), 1.0, atol=5e-3))

    # cross-check the folded/padded kernel against a direct module mirror
    ref = reference_forward(x, torch_params, head_num)
    max_err = float(jnp.max(jnp.abs(out - ref)))
    assert max_err < 2e-2, max_err

    print("KERNEL_OK")
</pallas_src>

<mosaic_0001>
module attributes {stable_mosaic.version = 11 : i64} {
  func.func @_fused_forward_kernel(%arg0: memref<8x32xf32, #tpu.memory_space<vmem>>, %arg1: memref<32x1536xf32, #tpu.memory_space<vmem>>, %arg2: memref<32x1536xf32, #tpu.memory_space<vmem>>, %arg3: memref<2x1x1536xf32, #tpu.memory_space<vmem>>, %arg4: memref<2x512x32xf32, #tpu.memory_space<vmem>>, %arg5: memref<2x1x32xf32, #tpu.memory_space<vmem>>, %arg6: memref<32x8xf32, #tpu.memory_space<vmem>>, %arg7: memref<1x8xf32, #tpu.memory_space<vmem>>, %arg8: memref<8x8xf32, #tpu.memory_space<vmem>>) attributes {dimension_semantics = [], scalar_prefetch = 0 : i64, scratch_operands = 0 : i64, tpu.core_type = #tpu.core_type<tc>} {
    %c0 = arith.constant 0 : index
    %c0_0 = arith.constant 0 : index
    %0 = vector.load %arg0[%c0, %c0_0] : memref<8x32xf32, #tpu.memory_space<vmem>>, vector<8x32xf32>
    %cst = arith.constant dense<0.000000e+00> : vector<8xf32>
    %1 = vector.multi_reduction <add>, %0, %cst [1] : vector<8x32xf32> to vector<8xf32>
    %2 = vector.shape_cast %1 : vector<8xf32> to vector<8x1xf32>
    %cst_1 = arith.constant 3.200000e+01 : f32
    %3 = vector.broadcast %cst_1 : f32 to vector<8x1xf32>
    %4 = arith.divf %2, %3 : vector<8x1xf32>
    %5 = vector.broadcast %4 : vector<8x1xf32> to vector<8x32xf32>
    %6 = arith.subf %0, %5 : vector<8x32xf32>
    %7 = arith.mulf %6, %6 : vector<8x32xf32>
    %cst_2 = arith.constant dense<0.000000e+00> : vector<8xf32>
    %8 = vector.multi_reduction <add>, %7, %cst_2 [1] : vector<8x32xf32> to vector<8xf32>
    %9 = vector.shape_cast %8 : vector<8xf32> to vector<8x1xf32>
    %cst_3 = arith.constant 0.0322580636 : f32
    %10 = vector.broadcast %cst_3 : f32 to vector<8x1xf32>
    %11 = arith.mulf %9, %10 : vector<8x1xf32>
    %12 = math.sqrt %11 : vector<8x1xf32>
    %cst_4 = arith.constant 9.99999997E-7 : f32
    %13 = vector.broadcast %cst_4 : f32 to vector<8x1xf32>
    %14 = arith.addf %12, %13 : vector<8x1xf32>
    %15 = tpu.reciprocal %14 {approx = true} : vector<8x1xf32> -> vector<8x1xf32>
    %16 = vector.broadcast %15 : vector<8x1xf32> to vector<8x32xf32>
    %17 = arith.mulf %6, %16 : vector<8x32xf32>
    %c0_5 = arith.constant 0 : index
    %c0_6 = arith.constant 0 : index
    %18 = vector.load %arg1[%c0_5, %c0_6] : memref<32x1536xf32, #tpu.memory_space<vmem>>, vector<32x1536xf32>
    %c0_7 = arith.constant 0 : index
    %c0_8 = arith.constant 0 : index
    %c0_9 = arith.constant 0 : index
    %19 = vector.load %arg3[%c0_7, %c0_8, %c0_9] : memref<2x1x1536xf32, #tpu.memory_space<vmem>>, vector<1x1x1536xf32>
    %20 = vector.shape_cast %19 : vector<1x1x1536xf32> to vector<1x1536xf32>
    %c0_10 = arith.constant 0 : index
    %c0_11 = arith.constant 0 : index
    %c0_12 = arith.constant 0 : index
    %21 = vector.load %arg4[%c0_10, %c0_11, %c0_12] : memref<2x512x32xf32, #tpu.memory_space<vmem>>, vector<1x512x32xf32>
    %22 = vector.shape_cast %21 : vector<1x512x32xf32> to vector<512x32xf32>
    %c0_13 = arith.constant 0 : index
    %c0_14 = arith.constant 0 : index
    %c0_15 = arith.constant 0 : index
    %23 = vector.load %arg5[%c0_13, %c0_14, %c0_15] : memref<2x1x32xf32, #tpu.memory_space<vmem>>, vector<1x1x32xf32>
    %24 = vector.shape_cast %23 : vector<1x1x32xf32> to vector<1x32xf32>
    %cst_16 = arith.constant dense<0.000000e+00> : vector<8x1536xf32>
    %25 = tpu.matmul %17, %18, %cst_16 {dimension_numbers = #tpu.dot_dimension_numbers<[1], [0], [0], [1], [0, 0, 1, 1], [], []>} : vector<8x32xf32>, vector<32x1536xf32>, vector<8x1536xf32> -> vector<8x1536xf32>
    %26 = vector.broadcast %20 : vector<1x1536xf32> to vector<8x1536xf32>
    %27 = arith.addf %25, %26 : vector<8x1536xf32>
    %28 = vector.extract_strided_slice %27 {offsets = [0, 0], sizes = [8, 512], strides = [1, 1]} : vector<8x1536xf32> to vector<8x512xf32>
    %29 = vector.extract_strided_slice %27 {offsets = [0, 512], sizes = [8, 512], strides = [1, 1]} : vector<8x1536xf32> to vector<8x512xf32>
    %30 = vector.extract_strided_slice %27 {offsets = [0, 1024], sizes = [8, 512], strides = [1, 1]} : vector<8x1536xf32> to vector<8x512xf32>
    %31 = arith.mulf %28, %29 : vector<8x512xf32>
    %32 = vector.extract_strided_slice %31 {offsets = [0, 0], sizes = [8, 128], strides = [1, 1]} : vector<8x512xf32> to vector<8x128xf32>
    %33 = vector.extract_strided_slice %31 {offsets = [0, 128], sizes = [8, 128], strides = [1, 1]} : vector<8x512xf32> to vector<8x128xf32>
    %34 = arith.addf %32, %33 : vector<8x128xf32>
    %35 = vector.extract_strided_slice %31 {offsets = [0, 256], sizes = [8, 128], strides = [1, 1]} : vector<8x512xf32> to vector<8x128xf32>
    %36 = arith.addf %34, %35 : vector<8x128xf32>
    %37 = vector.extract_strided_slice %31 {offsets = [0, 384], sizes = [8, 128], strides = [1, 1]} : vector<8x512xf32> to vector<8x128xf32>
    %38 = arith.addf %36, %37 : vector<8x128xf32>
    %cst_17 = arith.constant dense<0xFF800000> : vector<128xf32>
    %39 = vector.multi_reduction <maximumf>, %38, %cst_17 [0] : vector<8x128xf32> to vector<128xf32>
    %40 = vector.shape_cast %39 : vector<128xf32> to vector<1x128xf32>
    %41 = vector.broadcast %40 : vector<1x128xf32> to vector<8x128xf32>
    %42 = arith.subf %38, %41 : vector<8x128xf32>
    %43 = math.exp %42 : vector<8x128xf32>
    %cst_18 = arith.constant dense<0.000000e+00> : vector<128xf32>
    %44 = vector.multi_reduction <add>, %43, %cst_18 [0] : vector<8x128xf32> to vector<128xf32>
    %45 = vector.shape_cast %44 : vector<128xf32> to vector<1x128xf32>
    %46 = tpu.reciprocal %45 {approx = true} : vector<1x128xf32> -> vector<1x128xf32>
    %47 = vector.broadcast %46 : vector<1x128xf32> to vector<8x128xf32>
    %48 = arith.mulf %43, %47 : vector<8x128xf32>
    %49 = tpu.concatenate %48, %48, %48, %48 in 1 : vector<8x128xf32>, vector<8x128xf32>, vector<8x128xf32>, vector<8x128xf32> -> vector<8x512xf32>
    %50 = arith.mulf %49, %30 : vector<8x512xf32>
    %cst_19 = arith.constant dense<0.000000e+00> : vector<8x32xf32>
    %51 = tpu.matmul %50, %22, %cst_19 {dimension_numbers = #tpu.dot_dimension_numbers<[1], [0], [0], [1], [0, 0, 1, 1], [], []>} : vector<8x512xf32>, vector<512x32xf32>, vector<8x32xf32> -> vector<8x32xf32>
    %52 = vector.broadcast %24 : vector<1x32xf32> to vector<8x32xf32>
    %53 = arith.addf %51, %52 : vector<8x32xf32>
    %cst_20 = arith.constant dense<0.000000e+00> : vector<8xf32>
    %54 = vector.multi_reduction <add>, %53, %cst_20 [1] : vector<8x32xf32> to vector<8xf32>
    %55 = vector.shape_cast %54 : vector<8xf32> to vector<8x1xf32>
    %cst_21 = arith.constant 3.200000e+01 : f32
    %56 = vector.broadcast %cst_21 : f32 to vector<8x1xf32>
    %57 = arith.divf %55, %56 : vector<8x1xf32>
    %58 = vector.broadcast %57 : vector<8x1xf32> to vector<8x32xf32>
    %59 = arith.subf %53, %58 : vector<8x32xf32>
    %60 = arith.mulf %59, %59 : vector<8x32xf32>
    %cst_22 = arith.constant dense<0.000000e+00> : vector<8xf32>
    %61 = vector.multi_reduction <add>, %60, %cst_22 [1] : vector<8x32xf32> to vector<8xf32>
    %62 = vector.shape_cast %61 : vector<8xf32> to vector<8x1xf32>
    %cst_23 = arith.constant 0.0322580636 : f32
    %63 = vector.broadcast %cst_23 : f32 to vector<8x1xf32>
    %64 = arith.mulf %62, %63 : vector<8x1xf32>
    %65 = math.sqrt %64 : vector<8x1xf32>
    %cst_24 = arith.constant 9.99999997E-7 : f32
    %66 = vector.broadcast %cst_24 : f32 to vector<8x1xf32>
    %67 = arith.addf %65, %66 : vector<8x1xf32>
    %68 = tpu.reciprocal %67 {approx = true} : vector<8x1xf32> -> vector<8x1xf32>
    %69 = vector.broadcast %68 : vector<8x1xf32> to vector<8x32xf32>
    %70 = arith.mulf %59, %69 : vector<8x32xf32>
    %c0_25 = arith.constant 0 : index
    %c0_26 = arith.constant 0 : index
    %71 = vector.load %arg2[%c0_25, %c0_26] : memref<32x1536xf32, #tpu.memory_space<vmem>>, vector<32x1536xf32>
    %c1 = arith.constant 1 : index
    %c0_27 = arith.constant 0 : index
    %c0_28 = arith.constant 0 : index
    %72 = vector.load %arg3[%c1, %c0_27, %c0_28] : memref<2x1x1536xf32, #tpu.memory_space<vmem>>, vector<1x1x1536xf32>
    %73 = vector.shape_cast %72 : vector<1x1x1536xf32> to vector<1x1536xf32>
    %c1_29 = arith.constant 1 : index
    %c0_30 = arith.constant 0 : index
    %c0_31 = arith.constant 0 : index
    %74 = vector.load %arg4[%c1_29, %c0_30, %c0_31] : memref<2x512x32xf32, #tpu.memory_space<vmem>>, vector<1x512x32xf32>
    %75 = vector.shape_cast %74 : vector<1x512x32xf32> to vector<512x32xf32>
    %c1_32 = arith.constant 1 : index
    %c0_33 = arith.constant 0 : index
    %c0_34 = arith.constant 0 : index
    %76 = vector.load %arg5[%c1_32, %c0_33, %c0_34] : memref<2x1x32xf32, #tpu.memory_space<vmem>>, vector<1x1x32xf32>
    %77 = vector.shape_cast %76 : vector<1x1x32xf32> to vector<1x32xf32>
    %cst_35 = arith.constant dense<0.000000e+00> : vector<8x1536xf32>
    %78 = tpu.matmul %70, %71, %cst_35 {dimension_numbers = #tpu.dot_dimension_numbers<[1], [0], [0], [1], [0, 0, 1, 1], [], []>} : vector<8x32xf32>, vector<32x1536xf32>, vector<8x1536xf32> -> vector<8x1536xf32>
    %79 = vector.broadcast %73 : vector<1x1536xf32> to vector<8x1536xf32>
    %80 = arith.addf %78, %79 : vector<8x1536xf32>
    %81 = vector.extract_strided_slice %80 {offsets = [0, 0], sizes = [8, 512], strides = [1, 1]} : vector<8x1536xf32> to vector<8x512xf32>
    %82 = vector.extract_strided_slice %80 {offsets = [0, 512], sizes = [8, 512], strides = [1, 1]} : vector<8x1536xf32> to vector<8x512xf32>
    %83 = vector.extract_strided_slice %80 {offsets = [0, 1024], sizes = [8, 512], strides = [1, 1]} : vector<8x1536xf32> to vector<8x512xf32>
    %84 = arith.mulf %81, %82 : vector<8x512xf32>
    %85 = vector.extract_strided_slice %84 {offsets = [0, 0], sizes = [8, 128], strides = [1, 1]} : vector<8x512xf32> to vector<8x128xf32>
    %86 = vector.extract_strided_slice %84 {offsets = [0, 128], sizes = [8, 128], strides = [1, 1]} : vector<8x512xf32> to vector<8x128xf32>
    %87 = arith.addf %85, %86 : vector<8x128xf32>
    %88 = vector.extract_strided_slice %84 {offsets = [0, 256], sizes = [8, 128], strides = [1, 1]} : vector<8x512xf32> to vector<8x128xf32>
    %89 = arith.addf %87, %88 : vector<8x128xf32>
    %90 = vector.extract_strided_slice %84 {offsets = [0, 384], sizes = [8, 128], strides = [1, 1]} : vector<8x512xf32> to vector<8x128xf32>
    %91 = arith.addf %89, %90 : vector<8x128xf32>
    %cst_36 = arith.constant dense<0xFF800000> : vector<128xf32>
    %92 = vector.multi_reduction <maximumf>, %91, %cst_36 [0] : vector<8x128xf32> to vector<128xf32>
    %93 = vector.shape_cast %92 : vector<128xf32> to vector<1x128xf32>
    %94 = vector.broadcast %93 : vector<1x128xf32> to vector<8x128xf32>
    %95 = arith.subf %91, %94 : vector<8x128xf32>
    %96 = math.exp %95 : vector<8x128xf32>
    %cst_37 = arith.constant dense<0.000000e+00> : vector<128xf32>
    %97 = vector.multi_reduction <add>, %96, %cst_37 [0] : vector<8x128xf32> to vector<128xf32>
    %98 = vector.shape_cast %97 : vector<128xf32> to vector<1x128xf32>
    %99 = tpu.reciprocal %98 {approx = true} : vector<1x128xf32> -> vector<1x128xf32>
    %100 = vector.broadcast %99 : vector<1x128xf32> to vector<8x128xf32>
    %101 = arith.mulf %96, %100 : vector<8x128xf32>
    %102 = tpu.concatenate %101, %101, %101, %101 in 1 : vector<8x128xf32>, vector<8x128xf32>, vector<8x128xf32>, vector<8x128xf32> -> vector<8x512xf32>
    %103 = arith.mulf %102, %83 : vector<8x512xf32>
    %cst_38 = arith.constant dense<0.000000e+00> : vector<8x32xf32>
    %104 = tpu.matmul %103, %75, %cst_38 {dimension_numbers = #tpu.dot_dimension_numbers<[1], [0], [0], [1], [0, 0, 1, 1], [], []>} : vector<8x512xf32>, vector<512x32xf32>, vector<8x32xf32> -> vector<8x32xf32>
    %105 = vector.broadcast %77 : vector<1x32xf32> to vector<8x32xf32>
    %106 = arith.addf %104, %105 : vector<8x32xf32>
    %cst_39 = arith.constant dense<0.000000e+00> : vector<8xf32>
    %107 = vector.multi_reduction <add>, %106, %cst_39 [1] : vector<8x32xf32> to vector<8xf32>
    %108 = vector.shape_cast %107 : vector<8xf32> to vector<8x1xf32>
    %cst_40 = arith.constant 3.200000e+01 : f32
    %109 = vector.broadcast %cst_40 : f32 to vector<8x1xf32>
    %110 = arith.divf %108, %109 : vector<8x1xf32>
    %111 = vector.broadcast %110 : vector<8x1xf32> to vector<8x32xf32>
    %112 = arith.subf %106, %111 : vector<8x32xf32>
    %113 = arith.mulf %112, %112 : vector<8x32xf32>
    %cst_41 = arith.constant dense<0.000000e+00> : vector<8xf32>
    %114 = vector.multi_reduction <add>, %113, %cst_41 [1] : vector<8x32xf32> to vector<8xf32>
    %115 = vector.shape_cast %114 : vector<8xf32> to vector<8x1xf32>
    %cst_42 = arith.constant 0.0322580636 : f32
    %116 = vector.broadcast %cst_42 : f32 to vector<8x1xf32>
    %117 = arith.mulf %115, %116 : vector<8x1xf32>
    %118 = math.sqrt %117 : vector<8x1xf32>
    %cst_43 = arith.constant 9.99999997E-7 : f32
    %119 = vector.broadcast %cst_43 : f32 to vector<8x1xf32>
    %120 = arith.addf %118, %119 : vector<8x1xf32>
    %121 = tpu.reciprocal %120 {approx = true} : vector<8x1xf32> -> vector<8x1xf32>
    %122 = vector.broadcast %121 : vector<8x1xf32> to vector<8x32xf32>
    %123 = arith.mulf %112, %122 : vector<8x32xf32>
    %c0_44 = arith.constant 0 : index
    %c0_45 = arith.constant 0 : index
    %124 = vector.load %arg6[%c0_44, %c0_45] : memref<32x8xf32, #tpu.memory_space<vmem>>, vector<32x8xf32>
    %cst_46 = arith.constant dense<0.000000e+00> : vector<8x8xf32>
    %125 = tpu.matmul %123, %124, %cst_46 {dimension_numbers = #tpu.dot_dimension_numbers<[1], [0], [0], [1], [0, 0, 1, 1], [], []>} : vector<8x32xf32>, vector<32x8xf32>, vector<8x8xf32> -> vector<8x8xf32>
    %c0_47 = arith.constant 0 : index
    %c0_48 = arith.constant 0 : index
    %126 = vector.load %arg7[%c0_47, %c0_48] : memref<1x8xf32, #tpu.memory_space<vmem>>, vector<1x8xf32>
    %127 = vector.broadcast %126 : vector<1x8xf32> to vector<8x8xf32>
    %128 = arith.addf %125, %127 : vector<8x8xf32>
    %cst_49 = arith.constant dense<0xFF800000> : vector<8xf32>
    %129 = vector.multi_reduction <maximumf>, %128, %cst_49 [1] : vector<8x8xf32> to vector<8xf32>
    %130 = vector.shape_cast %129 : vector<8xf32> to vector<8x1xf32>
    %131 = vector.broadcast %130 : vector<8x1xf32> to vector<8x8xf32>
    %132 = arith.subf %128, %131 : vector<8x8xf32>
    %133 = math.exp %132 : vector<8x8xf32>
    %cst_50 = arith.constant dense<0.000000e+00> : vector<8xf32>
    %134 = vector.multi_reduction <add>, %133, %cst_50 [1] : vector<8x8xf32> to vector<8xf32>
    %135 = vector.shape_cast %134 : vector<8xf32> to vector<8x1xf32>
    %136 = tpu.reciprocal %135 {approx = true} : vector<8x1xf32> -> vector<8x1xf32>
    %137 = vector.broadcast %136 : vector<8x1xf32> to vector<8x8xf32>
    %138 = arith.mulf %133, %137 : vector<8x8xf32>
    %c0_51 = arith.constant 0 : index
    %c0_52 = arith.constant 0 : index
    %139 = vector.load %arg8[%c0_51, %c0_52] : memref<8x8xf32, #tpu.memory_space<vmem>>, vector<8x8xf32>
    tpu.vector_store %arg8[%c0_51, %c0_52], %138 {strides = array<i32>} : memref<8x8xf32, #tpu.memory_space<vmem>>, vector<8x8xf32>,
    return
  }
}

</mosaic_0001>

<llo_original>
// kernel: nlp_classify_forward.1
$region0: #{nlp_classify_forward.1}
  #allocation0 [shape = 'u32[]', space=smem, size = 0x4, offset = 0x4, fixed_abs, tag = 'smem constant byte address 0x4 - core index']
  #allocation1 [shape = 'u32[144,128]{1,0:T(1,128)}', space=vmem, size = 0x12000, scoped, tag = 'internal scratch']
  %s0 = inlined_call_operand.vmem [shape: f32[8,32], index: 0, kind: input, shape index: {}]
  %s1 = inlined_call_operand.vmem [shape: f32[32,1536], index: 1, kind: input, shape index: {}]
  %s2 = inlined_call_operand.vmem [shape: f32[32,1536], index: 2, kind: input, shape index: {}]
  %s3 = inlined_call_operand.vmem [shape: f32[2,1,1536], index: 3, kind: input, shape index: {}]
  %s4 = inlined_call_operand.vmem [shape: f32[2,512,32], index: 4, kind: input, shape index: {}]
  %s5 = inlined_call_operand.vmem [shape: f32[2,1,32], index: 5, kind: input, shape index: {}]
  %s6 = inlined_call_operand.vmem [shape: f32[32,8], index: 6, kind: input, shape index: {}]
  %s7 = inlined_call_operand.vmem [shape: f32[1,8], index: 7, kind: input, shape index: {}]
  %s8 = inlined_call_operand.hbm [shape: f32[8,8], index: 8, kind: output, shape index: {}]
  %s9 = sld [smem:[#allocation0]]
  $region42: #{nlp_classify_forward.1} parent=0
    _
  %s11 = ssub.s32 1, %s9
  %s12 = scalar_select 0, %s11, %s9
  $region1: #{nlp_classify_forward.1} parent=0
    #allocation2 [shape = 'u8[4096]{0}', space=vmem, size = 0x1000, scoped, tag = 'output window, operand 0, single buffered']
    #allocation3 [shape = 's32[1]{0}', space=sflag, size = 0x4, scoped, tag = 'scoped memory for nlp_classify_forward.1']
    %13 = vsyncpa [#allocation3], 0
    // Predicated region
    $region2: #{nlp_classify_forward.1} parent=1 // pred_check
      _
    $region3: #{nlp_classify_forward.1} parent=1 // pred_check_branch
      %15 = sbr.rel (0) target = $region5
    $region4: #{nlp_classify_forward.1} parent=1 // pred_region
      _
    $region5: #{nlp_classify_forward.1} parent=1 // pred_fallthru
      _
    // Predicated region
    $region6: #{nlp_classify_forward.1} parent=1 // pred_check
      _
    $region7: #{nlp_classify_forward.1} parent=1 // pred_check_branch
      %17 = sbr.rel (0) target = $region9
    $region8: #{nlp_classify_forward.1} parent=1 // pred_region
      _
    $region9: #{nlp_classify_forward.1} parent=1 // pred_fallthru
      _
    // Predicated region
    $region10: #{nlp_classify_forward.1} parent=1 // pred_check
      _
    $region11: #{nlp_classify_forward.1} parent=1 // pred_check_branch
      %19 = sbr.rel (0) target = $region13
    $region12: #{nlp_classify_forward.1} parent=1 // pred_region
      _
    $region13: #{nlp_classify_forward.1} parent=1 // pred_fallthru
      _
    // Predicated region
    $region14: #{nlp_classify_forward.1} parent=1 // pred_check
      _
    $region15: #{nlp_classify_forward.1} parent=1 // pred_check_branch
      %21 = sbr.rel (0) target = $region17
    $region16: #{nlp_classify_forward.1} parent=1 // pred_region
      _
    $region17: #{nlp_classify_forward.1} parent=1 // pred_fallthru
      _
    // Predicated region
    $region18: #{nlp_classify_forward.1} parent=1 // pred_check
      _
    $region19: #{nlp_classify_forward.1} parent=1 // pred_check_branch
      %23 = sbr.rel (0) target = $region21
    $region20: #{nlp_classify_forward.1} parent=1 // pred_region
      _
    $region21: #{nlp_classify_forward.1} parent=1 // pred_fallthru
      _
    // Predicated region
    $region22: #{nlp_classify_forward.1} parent=1 // pred_check
      _
    $region23: #{nlp_classify_forward.1} parent=1 // pred_check_branch
      %25 = sbr.rel (0) target = $region25
    $region24: #{nlp_classify_forward.1} parent=1 // pred_region
      _
    $region25: #{nlp_classify_forward.1} parent=1 // pred_fallthru
      _
    // Predicated region
    $region26: #{nlp_classify_forward.1} parent=1 // pred_check
      _
    $region27: #{nlp_classify_forward.1} parent=1 // pred_check_branch
      %27 = sbr.rel (0) target = $region29
    $region28: #{nlp_classify_forward.1} parent=1 // pred_region
      _
    $region29: #{nlp_classify_forward.1} parent=1 // pred_fallthru
      _
    // Predicated region
    $region30: #{nlp_classify_forward.1} parent=1 // pred_check
      _
    $region31: #{nlp_classify_forward.1} parent=1 // pred_check_branch
      %29 = sbr.rel (0) target = $region33
    $region32: #{nlp_classify_forward.1} parent=1 // pred_region
      _
    $region33: #{nlp_classify_forward.1} parent=1 // pred_fallthru
      _
    %v30 = vld [vmem:[%s0] sm:$0xff]
    %vm31 = vcmask 261120
    %v32 = vsel %vm31, %v30, 0.0
    %33 = vadd.xlane.f32.xlu0 %v32
    %v34 = vpop.xlane.xlu0 %33
    %v35 = vrcp.pop 32.0
    %v36 = vmul.f32 %v34, %v35
    %v37 = vsub.f32 %v30, %v36
    %v38 = vmul.f32 %v37, %v37
    %v39 = vsel %vm31, %v38, 0.0
    %40 = vadd.xlane.f32.xlu0 %v39
    %v41 = vpop.xlane.xlu0 %40
    %v42 = vmul.f32 %v41, 0.032258064
    %v43 = vrsqrt.pop %v42
    %v44 = vmul.f32 %v42, %v43
    %vm45 = vcmp.eq.f32.partialorder %v42, inf
    %v46 = vsel %vm45, %v42, %v44
    %vm47 = vcmp.eq.f32.partialorder %v42, 0.0
    %v48 = vand.u32 %v42, 2147483648
    %v49 = vsel %vm47, %v48, %v46
    %v50 = vadd.f32 %v49, 1e-06
    %v51 = vrcp.pop %v50
    %v52 = vmul.f32 %v37, %v51
    %v53 = vld [vmem:[%s1] sm:$0xff]
    %v54 = vld [vmem:[%s1 + $0x8] sm:$0xff]
    %v55 = vld [vmem:[%s1 + $0x10] sm:$0xff]
    %v56 = vld [vmem:[%s1 + $0x18] sm:$0xff]
    %v57 = vld [vmem:[%s1 + $0x20] sm:$0xff]
    %v58 = vld [vmem:[%s1 + $0x28] sm:$0xff]
    %v59 = vld [vmem:[%s1 + $0x30] sm:$0xff]
    %v60 = vld [vmem:[%s1 + $0x38] sm:$0xff]
    %v61 = vld [vmem:[%s1 + $0x40] sm:$0xff]
    %v62 = vld [vmem:[%s1 + $0x48] sm:$0xff]
    %v63 = vld [vmem:[%s1 + $0x50] sm:$0xff]
    %v64 = vld [vmem:[%s1 + $0x58] sm:$0xff]
    %v65 = vld [vmem:[%s1 + $0x60] sm:$0xff]
    %v66 = vld [vmem:[%s1 + $0x68] sm:$0xff]
    %v67 = vld [vmem:[%s1 + $0x70] sm:$0xff]
    %v68 = vld [vmem:[%s1 + $0x78] sm:$0xff]
    %v69 = vld [vmem:[%s1 + $0x80] sm:$0xff]
    %v70 = vld [vmem:[%s1 + $0x88] sm:$0xff]
    %v71 = vld [vmem:[%s1 + $0x90] sm:$0xff]
    %v72 = vld [vmem:[%s1 + $0x98] sm:$0xff]
    %v73 = vld [vmem:[%s1 + $0xa0] sm:$0xff]
    %v74 = vld [vmem:[%s1 + $0xa8] sm:$0xff]
    %v75 = vld [vmem:[%s1 + $0xb0] sm:$0xff]
    %v76 = vld [vmem:[%s1 + $0xb8] sm:$0xff]
    %v77 = vld [vmem:[%s1 + $0xc0] sm:$0xff]
    %v78 = vld [vmem:[%s1 + $0xc8] sm:$0xff]
    %v79 = vld [vmem:[%s1 + $0xd0] sm:$0xff]
    %v80 = vld [vmem:[%s1 + $0xd8] sm:$0xff]
    %v81 = vld [vmem:[%s1 + $0xe0] sm:$0xff]
    %v82 = vld [vmem:[%s1 + $0xe8] sm:$0xff]
    %v83 = vld [vmem:[%s1 + $0xf0] sm:$0xff]
    %v84 = vld [vmem:[%s1 + $0xf8] sm:$0xff]
    %v85 = vld [vmem:[%s1 + $0x100] sm:$0xff]
    %v86 = vld [vmem:[%s1 + $0x108] sm:$0xff]
    %v87 = vld [vmem:[%s1 + $0x110] sm:$0xff]
    %v88 = vld [vmem:[%s1 + $0x118] sm:$0xff]
    %v89 = vld [vmem:[%s1 + $0x120] sm:$0xff]
    %v90 = vld [vmem:[%s1 + $0x128] sm:$0xff]
    %v91 = vld [vmem:[%s1 + $0x130] sm:$0xff]
    %v92 = vld [vmem:[%s1 + $0x138] sm:$0xff]
    %v93 = vld [vmem:[%s1 + $0x140] sm:$0xff]
    %v94 = vld [vmem:[%s1 + $0x148] sm:$0xff]
    %v95 = vld [vmem:[%s1 + $0x150] sm:$0xff]
    %v96 = vld [vmem:[%s1 + $0x158] sm:$0xff]
    %v97 = vld [vmem:[%s1 + $0x160] sm:$0xff]
    %v98 = vld [vmem:[%s1 + $0x168] sm:$0xff]
    %v99 = vld [vmem:[%s1 + $0x170] sm:$0xff]
    %v100 = vld [vmem:[%s1 + $0x178] sm:$0xff]
    %v101 = vld [vmem:[%s3] sm:$0xff]
    %v102 = vld [vmem:[%s3 + $0x8] sm:$0xf]
    %v103 = vld [vmem:[%s4] sm:$0xff]
    %v104 = vld [vmem:[%s4 + $0x8] sm:$0xff]
    %v105 = vld [vmem:[%s4 + $0x10] sm:$0xff]
    %v106 = vld [vmem:[%s4 + $0x18] sm:$0xff]
    %v107 = vld [vmem:[%s4 + $0x20] sm:$0xff]
    %v108 = vld [vmem:[%s4 + $0x28] sm:$0xff]
    %v109 = vld [vmem:[%s4 + $0x30] sm:$0xff]
    %v110 = vld [vmem:[%s4 + $0x38] sm:$0xff]
    %v111 = vld [vmem:[%s4 + $0x40] sm:$0xff]
    %v112 = vld [vmem:[%s4 + $0x48] sm:$0xff]
    %v113 = vld [vmem:[%s4 + $0x50] sm:$0xff]
    %v114 = vld [vmem:[%s4 + $0x58] sm:$0xff]
    %v115 = vld [vmem:[%s4 + $0x60] sm:$0xff]
    %v116 = vld [vmem:[%s4 + $0x68] sm:$0xff]
    %v117 = vld [vmem:[%s4 + $0x70] sm:$0xff]
    %v118 = vld [vmem:[%s4 + $0x78] sm:$0xff]
    %v119 = vld [vmem:[%s4 + $0x80] sm:$0xff]
    %v120 = vld [vmem:[%s4 + $0x88] sm:$0xff]
    %v121 = vld [vmem:[%s4 + $0x90] sm:$0xff]
    %v122 = vld [vmem:[%s4 + $0x98] sm:$0xff]
    %v123 = vld [vmem:[%s4 + $0xa0] sm:$0xff]
    %v124 = vld [vmem:[%s4 + $0xa8] sm:$0xff]
    %v125 = vld [vmem:[%s4 + $0xb0] sm:$0xff]
    %v126 = vld [vmem:[%s4 + $0xb8] sm:$0xff]
    %v127 = vld [vmem:[%s4 + $0xc0] sm:$0xff]
    %v128 = vld [vmem:[%s4 + $0xc8] sm:$0xff]
    %v129 = vld [vmem:[%s4 + $0xd0] sm:$0xff]
    %v130 = vld [vmem:[%s4 + $0xd8] sm:$0xff]
    %v131 = vld [vmem:[%s4 + $0xe0] sm:$0xff]
    %v132 = vld [vmem:[%s4 + $0xe8] sm:$0xff]
    %v133 = vld [vmem:[%s4 + $0xf0] sm:$0xff]
    %v134 = vld [vmem:[%s4 + $0xf8] sm:$0xff]
    %v135 = vld [vmem:[%s4 + $0x100] sm:$0xff]
    %v136 = vld [vmem:[%s4 + $0x108] sm:$0xff]
    %v137 = vld [vmem:[%s4 + $0x110] sm:$0xff]
    %v138 = vld [vmem:[%s4 + $0x118] sm:$0xff]
    %v139 = vld [vmem:[%s4 + $0x120] sm:$0xff]
    %v140 = vld [vmem:[%s4 + $0x128] sm:$0xff]
    %v141 = vld [vmem:[%s4 + $0x130] sm:$0xff]
    %v142 = vld [vmem:[%s4 + $0x138] sm:$0xff]
    %v143 = vld [vmem:[%s4 + $0x140] sm:$0xff]
    %v144 = vld [vmem:[%s4 + $0x148] sm:$0xff]
    %v145 = vld [vmem:[%s4 + $0x150] sm:$0xff]
    %v146 = vld [vmem:[%s4 + $0x158] sm:$0xff]
    %v147 = vld [vmem:[%s4 + $0x160] sm:$0xff]
    %v148 = vld [vmem:[%s4 + $0x168] sm:$0xff]
    %v149 = vld [vmem:[%s4 + $0x170] sm:$0xff]
    %v150 = vld [vmem:[%s4 + $0x178] sm:$0xff]
    %v151 = vld [vmem:[%s4 + $0x180] sm:$0xff]
    %v152 = vld [vmem:[%s4 + $0x188] sm:$0xff]
    %v153 = vld [vmem:[%s4 + $0x190] sm:$0xff]
    %v154 = vld [vmem:[%s4 + $0x198] sm:$0xff]
    %v155 = vld [vmem:[%s4 + $0x1a0] sm:$0xff]
    %v156 = vld [vmem:[%s4 + $0x1a8] sm:$0xff]
    %v157 = vld [vmem:[%s4 + $0x1b0] sm:$0xff]
    %v158 = vld [vmem:[%s4 + $0x1b8] sm:$0xff]
    %v159 = vld [vmem:[%s4 + $0x1c0] sm:$0xff]
    %v160 = vld [vmem:[%s4 + $0x1c8] sm:$0xff]
    %v161 = vld [vmem:[%s4 + $0x1d0] sm:$0xff]
    %v162 = vld [vmem:[%s4 + $0x1d8] sm:$0xff]
    %v163 = vld [vmem:[%s4 + $0x1e0] sm:$0xff]
    %v164 = vld [vmem:[%s4 + $0x1e8] sm:$0xff]
    %v165 = vld [vmem:[%s4 + $0x1f0] sm:$0xff]
    %v166 = vld [vmem:[%s4 + $0x1f8] sm:$0xff]
    %v167 = vld [vmem:[%s5] sm:$0x1]
    %v170 = vlaneseq
    %v171 = vshrl.u32 %v170, 7
    %v172 = vsub.s32 0, %v171
    %v173 = vrot.slane %v101, %v172
    %v174 = vlaneseq
    %v175 = vshrl.u32 %v174, 7
    %v176 = vsub.s32 1, %v175
    %v177 = vrot.slane %v101, %v176
    %v178 = vlaneseq
    %v179 = vshrl.u32 %v178, 7
    %v180 = vsub.s32 2, %v179
    %v181 = vrot.slane %v101, %v180
    %v182 = vlaneseq
    %v183 = vshrl.u32 %v182, 7
    %v184 = vsub.s32 3, %v183
    %v185 = vrot.slane %v101, %v184
    %v186 = vlaneseq
    %v187 = vshrl.u32 %v186, 7
    %v188 = vsub.s32 4, %v187
    %v189 = vrot.slane %v101, %v188
    %v190 = vlaneseq
    %v191 = vshrl.u32 %v190, 7
    %v192 = vsub.s32 5, %v191
    %v193 = vrot.slane %v101, %v192
    %v194 = vlaneseq
    %v195 = vshrl.u32 %v194, 7
    %v196 = vsub.s32 6, %v195
    %v197 = vrot.slane %v101, %v196
    %v198 = vlaneseq
    %v199 = vshrl.u32 %v198, 7
    %v200 = vsub.s32 7, %v199
    %v201 = vrot.slane %v101, %v200
    %v202 = vlaneseq
    %v203 = vshrl.u32 %v202, 7
    %v204 = vsub.s32 0, %v203
    %v205 = vrot.slane %v102, %v204
    %v206 = vlaneseq
    %v207 = vshrl.u32 %v206, 7
    %v208 = vsub.s32 1, %v207
    %v209 = vrot.slane %v102, %v208
    %v210 = vlaneseq
    %v211 = vshrl.u32 %v210, 7
    %v212 = vsub.s32 2, %v211
    %v213 = vrot.slane %v102, %v212
    %v214 = vlaneseq
    %v215 = vshrl.u32 %v214, 7
    %v216 = vsub.s32 3, %v215
    %v217 = vrot.slane %v102, %v216
    %v231 = vsel %vm31, %v52, 0
    %233 = vmatprep.subr.mxu0 %v54
    %234 = vmatpush1.msra.mxu0 %v53
    %235 = vmatprep.subr.mxu0 %v66
    %236 = vmatpush1.msra.mxu0 %v65
    %237 = vmatprep.subr.mxu0 %v78
    %238 = vmatpush1.msra.mxu0 %v77
    %239 = vmatprep.subr.mxu0 %v90
    %240 = vmatpush1.msra.mxu0 %v89
    %241 = vmatprep.subr.mxu0 0.0
    %242 = vmatpush1.msra.mxu0 0.0
    %243 = vmatprep.subr.mxu0 0.0
    %244 = vmatpush1.msra.mxu0 0.0
    %245 = vmatprep.subr.mxu0 0.0
    %246 = vmatpush1.msra.mxu0 0.0
    %247 = vmatprep.subr.mxu0 0.0
    %248 = vmatpush1.msra.mxu0 0.0
    %249 = vmatprep.subr.mxu0 0.0
    %250 = vmatpush1.msra.mxu0 0.0
    %251 = vmatprep.subr.mxu0 0.0
    %252 = vmatpush1.msra.mxu0 0.0
    %253 = vmatprep.subr.mxu0 0.0
    %254 = vmatpush1.msra.mxu0 0.0
    %255 = vmatprep.subr.mxu0 0.0
    %256 = vmatpush1.msra.mxu0 0.0
    %257 = vmatprep.subr.mxu0 0.0
    %258 = vmatpush1.msra.mxu0 0.0
    %259 = vmatprep.subr.mxu0 0.0
    %260 = vmatpush1.msra.mxu0 0.0
    %261 = vmatprep.subr.mxu0 0.0
    %262 = vmatpush1.msra.mxu0 0.0
    %263 = vmatprep.subr.mxu0 0.0
    %264 = vmatpush1.msra.mxu0 0.0
    %265 = vmatprep.subr.mxu0 0.0
    %266 = vmatpush1.msra.mxu0 0.0
    %267 = vmatprep.subr.mxu0 0.0
    %268 = vmatpush1.msra.mxu0 0.0
    %269 = vmatprep.subr.mxu0 0.0
    %270 = vmatpush1.msra.mxu0 0.0
    %271 = vmatprep.subr.mxu0 0.0
    %272 = vmatpush1.msra.mxu0 0.0
    %273 = vmatprep.subr.mxu0 0.0
    %274 = vmatpush1.msra.mxu0 0.0
    %275 = vmatprep.subr.mxu0 0.0
    %276 = vmatpush1.msra.mxu0 0.0
    %277 = vmatprep.subr.mxu0 0.0
    %278 = vmatpush1.msra.mxu0 0.0
    %279 = vmatprep.subr.mxu0 0.0
    %280 = vmatpush1.msra.mxu0 0.0
    %281 = vmatprep.subr.mxu0 0.0
    %282 = vmatpush1.msra.mxu0 0.0
    %283 = vmatprep.subr.mxu0 0.0
    %284 = vmatpush1.msra.mxu0 0.0
    %285 = vmatprep.subr.mxu0 0.0
    %286 = vmatpush1.msra.mxu0 0.0
    %287 = vmatprep.subr.mxu0 0.0
    %288 = vmatpush1.msra.mxu0 0.0
    %289 = vmatprep.subr.mxu0 0.0
    %290 = vmatpush1.msra.mxu0 0.0
    %291 = vmatprep.subr.mxu0 0.0
    %292 = vmatpush1.msra.mxu0 0.0
    %293 = vmatprep.subr.mxu0 0.0
    %294 = vmatpush1.msra.mxu0 0.0
    %295 = vmatprep.subr.mxu0 0.0
    %296 = vmatpush1.msra.mxu0 0.0
    %297 = vmatprep.mubr.f32.mxu0 0.0
    %298 = vmatmul.mubr.f32.gmra.mrb[0].mxu0 %v231
    %v299 = vpop.f32.mrb[0].mxu0
    %v300 = vadd.f32 %v173, %v299
    %v301 = vpop.f32.mrb[0].mxu0
    %v302 = vadd.f32 %v177, %v301
    %303 = vdwg.mxu0
    %304 = vmatprep.subr.mxu0 %v56
    %305 = vmatpush1.msra.mxu0 %v55
    %306 = vmatprep.subr.mxu0 %v68
    %307 = vmatpush1.msra.mxu0 %v67
    %308 = vmatprep.subr.mxu0 %v80
    %309 = vmatpush1.msra.mxu0 %v79
    %310 = vmatprep.subr.mxu0 %v92
    %311 = vmatpush1.msra.mxu0 %v91
    %312 = vmatprep.subr.mxu0 0.0
    %313 = vmatpush1.msra.mxu0 0.0
    %314 = vmatprep.subr.mxu0 0.0
    %315 = vmatpush1.msra.mxu0 0.0
    %316 = vmatprep.subr.mxu0 0.0
    %317 = vmatpush1.msra.mxu0 0.0
    %318 = vmatprep.subr.mxu0 0.0
    %319 = vmatpush1.msra.mxu0 0.0
    %320 = vmatprep.subr.mxu0 0.0
    %321 = vmatpush1.msra.mxu0 0.0
    %322 = vmatprep.subr.mxu0 0.0
    %323 = vmatpush1.msra.mxu0 0.0
    %324 = vmatprep.subr.mxu0 0.0
    %325 = vmatpush1.msra.mxu0 0.0
    %326 = vmatprep.subr.mxu0 0.0
    %327 = vmatpush1.msra.mxu0 0.0
    %328 = vmatprep.subr.mxu0 0.0
    %329 = vmatpush1.msra.mxu0 0.0
    %330 = vmatprep.subr.mxu0 0.0
    %331 = vmatpush1.msra.mxu0 0.0
    %332 = vmatprep.subr.mxu0 0.0
    %333 = vmatpush1.msra.mxu0 0.0
    %334 = vmatprep.subr.mxu0 0.0
    %335 = vmatpush1.msra.mxu0 0.0
    %336 = vmatprep.subr.mxu0 0.0
    %337 = vmatpush1.msra.mxu0 0.0
    %338 = vmatprep.subr.mxu0 0.0
    %339 = vmatpush1.msra.mxu0 0.0
    %340 = vmatprep.subr.mxu0 0.0
    %341 = vmatpush1.msra.mxu0 0.0
    %342 = vmatprep.subr.mxu0 0.0
    %343 = vmatpush1.msra.mxu0 0.0
    %344 = vmatprep.subr.mxu0 0.0
    %345 = vmatpush1.msra.mxu0 0.0
    %346 = vmatprep.subr.mxu0 0.0
    %347 = vmatpush1.msra.mxu0 0.0
    %348 = vmatprep.subr.mxu0 0.0
    %349 = vmatpush1.msra.mxu0 0.0
    %350 = vmatprep.subr.mxu0 0.0
    %351 = vmatpush1.msra.mxu0 0.0
    %352 = vmatprep.subr.mxu0 0.0
    %353 = vmatpush1.msra.mxu0 0.0
    %354 = vmatprep.subr.mxu0 0.0
    %355 = vmatpush1.msra.mxu0 0.0
    %356 = vmatprep.subr.mxu0 0.0
    %357 = vmatpush1.msra.mxu0 0.0
    %358 = vmatprep.subr.mxu0 0.0
    %359 = vmatpush1.msra.mxu0 0.0
    %360 = vmatprep.subr.mxu0 0.0
    %361 = vmatpush1.msra.mxu0 0.0
    %362 = vmatprep.subr.mxu0 0.0
    %363 = vmatpush1.msra.mxu0 0.0
    %364 = vmatprep.subr.mxu0 0.0
    %365 = vmatpush1.msra.mxu0 0.0
    %366 = vmatprep.subr.mxu0 0.0
    %367 = vmatpush1.msra.mxu0 0.0
    %368 = vmatprep.mubr.f32.mxu0 0.0
    %369 = vmatmul.mubr.f32.gmra.mrb[0].mxu0 %v231
    %v370 = vpop.f32.mrb[0].mxu0
    %v371 = vadd.f32 %v181, %v370
    %v372 = vpop.f32.mrb[0].mxu0
    %v373 = vadd.f32 %v185, %v372
    %374 = vdwg.mxu0
    %375 = vmatprep.subr.mxu0 %v58
    %376 = vmatpush1.msra.mxu0 %v57
    %377 = vmatprep.subr.mxu0 %v70
    %378 = vmatpush1.msra.mxu0 %v69
    %379 = vmatprep.subr.mxu0 %v82
    %380 = vmatpush1.msra.mxu0 %v81
    %381 = vmatprep.subr.mxu0 %v94
    %382 = vmatpush1.msra.mxu0 %v93
    %383 = vmatprep.subr.mxu0 0.0
    %384 = vmatpush1.msra.mxu0 0.0
    %385 = vmatprep.subr.mxu0 0.0
    %386 = vmatpush1.msra.mxu0 0.0
    %387 = vmatprep.subr.mxu0 0.0
    %388 = vmatpush1.msra.mxu0 0.0
    %389 = vmatprep.subr.mxu0 0.0
    %390 = vmatpush1.msra.mxu0 0.0
    %391 = vmatprep.subr.mxu0 0.0
    %392 = vmatpush1.msra.mxu0 0.0
    %393 = vmatprep.subr.mxu0 0.0
    %394 = vmatpush1.msra.mxu0 0.0
    %395 = vmatprep.subr.mxu0 0.0
    %396 = vmatpush1.msra.mxu0 0.0
    %397 = vmatprep.subr.mxu0 0.0
    %398 = vmatpush1.msra.mxu0 0.0
    %399 = vmatprep.subr.mxu0 0.0
    %400 = vmatpush1.msra.mxu0 0.0
    %401 = vmatprep.subr.mxu0 0.0
    %402 = vmatpush1.msra.mxu0 0.0
    %403 = vmatprep.subr.mxu0 0.0
    %404 = vmatpush1.msra.mxu0 0.0
    %405 = vmatprep.subr.mxu0 0.0
    %406 = vmatpush1.msra.mxu0 0.0
    %407 = vmatprep.subr.mxu0 0.0
    %408 = vmatpush1.msra.mxu0 0.0
    %409 = vmatprep.subr.mxu0 0.0
    %410 = vmatpush1.msra.mxu0 0.0
    %411 = vmatprep.subr.mxu0 0.0
    %412 = vmatpush1.msra.mxu0 0.0
    %413 = vmatprep.subr.mxu0 0.0
    %414 = vmatpush1.msra.mxu0 0.0
    %415 = vmatprep.subr.mxu0 0.0
    %416 = vmatpush1.msra.mxu0 0.0
    %417 = vmatprep.subr.mxu0 0.0
    %418 = vmatpush1.msra.mxu0 0.0
    %419 = vmatprep.subr.mxu0 0.0
    %420 = vmatpush1.msra.mxu0 0.0
    %421 = vmatprep.subr.mxu0 0.0
    %422 = vmatpush1.msra.mxu0 0.0
    %423 = vmatprep.subr.mxu0 0.0
    %424 = vmatpush1.msra.mxu0 0.0
    %425 = vmatprep.subr.mxu0 0.0
    %426 = vmatpush1.msra.mxu0 0.0
    %427 = vmatprep.subr.mxu0 0.0
    %428 = vmatpush1.msra.mxu0 0.0
    %429 = vmatprep.subr.mxu0 0.0
    %430 = vmatpush1.msra.mxu0 0.0
    %431 = vmatprep.subr.mxu0 0.0
    %432 = vmatpush1.msra.mxu0 0.0
    %433 = vmatprep.subr.mxu0 0.0
    %434 = vmatpush1.msra.mxu0 0.0
    %435 = vmatprep.subr.mxu0 0.0
    %436 = vmatpush1.msra.mxu0 0.0
    %437 = vmatprep.subr.mxu0 0.0
    %438 = vmatpush1.msra.mxu0 0.0
    %439 = vmatprep.mubr.f32.mxu0 0.0
    %440 = vmatmul.mubr.f32.gmra.mrb[0].mxu0 %v231
    %v441 = vpop.f32.mrb[0].mxu0
    %v442 = vadd.f32 %v189, %v441
    %v443 = vpop.f32.mrb[0].mxu0
    %v444 = vadd.f32 %v193, %v443
    %445 = vdwg.mxu0
    %446 = vmatprep.subr.mxu0 %v60
    %447 = vmatpush1.msra.mxu0 %v59
    %448 = vmatprep.subr.mxu0 %v72
    %449 = vmatpush1.msra.mxu0 %v71
    %450 = vmatprep.subr.mxu0 %v84
    %451 = vmatpush1.msra.mxu0 %v83
    %452 = vmatprep.subr.mxu0 %v96
    %453 = vmatpush1.msra.mxu0 %v95
    %454 = vmatprep.subr.mxu0 0.0
    %455 = vmatpush1.msra.mxu0 0.0
    %456 = vmatprep.subr.mxu0 0.0
    %457 = vmatpush1.msra.mxu0 0.0
    %458 = vmatprep.subr.mxu0 0.0
    %459 = vmatpush1.msra.mxu0 0.0
    %460 = vmatprep.subr.mxu0 0.0
    %461 = vmatpush1.msra.mxu0 0.0
    %462 = vmatprep.subr.mxu0 0.0
    %463 = vmatpush1.msra.mxu0 0.0
    %464 = vmatprep.subr.mxu0 0.0
    %465 = vmatpush1.msra.mxu0 0.0
    %466 = vmatprep.subr.mxu0 0.0
    %467 = vmatpush1.msra.mxu0 0.0
    %468 = vmatprep.subr.mxu0 0.0
    %469 = vmatpush1.msra.mxu0 0.0
    %470 = vmatprep.subr.mxu0 0.0
    %471 = vmatpush1.msra.mxu0 0.0
    %472 = vmatprep.subr.mxu0 0.0
    %473 = vmatpush1.msra.mxu0 0.0
    %474 = vmatprep.subr.mxu0 0.0
    %475 = vmatpush1.msra.mxu0 0.0
    %476 = vmatprep.subr.mxu0 0.0
    %477 = vmatpush1.msra.mxu0 0.0
    %478 = vmatprep.subr.mxu0 0.0
    %479 = vmatpush1.msra.mxu0 0.0
    %480 = vmatprep.subr.mxu0 0.0
    %481 = vmatpush1.msra.mxu0 0.0
    %482 = vmatprep.subr.mxu0 0.0
    %483 = vmatpush1.msra.mxu0 0.0
    %484 = vmatprep.subr.mxu0 0.0
    %485 = vmatpush1.msra.mxu0 0.0
    %486 = vmatprep.subr.mxu0 0.0
    %487 = vmatpush1.msra.mxu0 0.0
    %488 = vmatprep.subr.mxu0 0.0
    %489 = vmatpush1.msra.mxu0 0.0
    %490 = vmatprep.subr.mxu0 0.0
    %491 = vmatpush1.msra.mxu0 0.0
    %492 = vmatprep.subr.mxu0 0.0
    %493 = vmatpush1.msra.mxu0 0.0
    %494 = vmatprep.subr.mxu0 0.0
    %495 = vmatpush1.msra.mxu0 0.0
    %496 = vmatprep.subr.mxu0 0.0
    %497 = vmatpush1.msra.mxu0 0.0
    %498 = vmatprep.subr.mxu0 0.0
    %499 = vmatpush1.msra.mxu0 0.0
    %500 = vmatprep.subr.mxu0 0.0
    %501 = vmatpush1.msra.mxu0 0.0
    %502 = vmatprep.subr.mxu0 0.0
    %503 = vmatpush1.msra.mxu0 0.0
    %504 = vmatprep.subr.mxu0 0.0
    %505 = vmatpush1.msra.mxu0 0.0
    %506 = vmatprep.subr.mxu0 0.0
    %507 = vmatpush1.msra.mxu0 0.0
    %508 = vmatprep.subr.mxu0 0.0
    %509 = vmatpush1.msra.mxu0 0.0
    %510 = vmatprep.mubr.f32.mxu0 0.0
    %511 = vmatmul.mubr.f32.gmra.mrb[0].mxu0 %v231
    %v512 = vpop.f32.mrb[0].mxu0
    %v513 = vadd.f32 %v197, %v512
    %v514 = vpop.f32.mrb[0].mxu0
    %v515 = vadd.f32 %v201, %v514
    %516 = vdwg.mxu0
    %517 = vmatprep.subr.mxu0 %v62
    %518 = vmatpush1.msra.mxu0 %v61
    %519 = vmatprep.subr.mxu0 %v74
    %520 = vmatpush1.msra.mxu0 %v73
    %521 = vmatprep.subr.mxu0 %v86
    %522 = vmatpush1.msra.mxu0 %v85
    %523 = vmatprep.subr.mxu0 %v98
    %524 = vmatpush1.msra.mxu0 %v97
    %525 = vmatprep.subr.mxu0 0.0
    %526 = vmatpush1.msra.mxu0 0.0
    %527 = vmatprep.subr.mxu0 0.0
    %528 = vmatpush1.msra.mxu0 0.0
    %529 = vmatprep.subr.mxu0 0.0
    %530 = vmatpush1.msra.mxu0 0.0
    %531 = vmatprep.subr.mxu0 0.0
    %532 = vmatpush1.msra.mxu0 0.0
    %533 = vmatprep.subr.mxu0 0.0
    %534 = vmatpush1.msra.mxu0 0.0
    %535 = vmatprep.subr.mxu0 0.0
    %536 = vmatpush1.msra.mxu0 0.0
    %537 = vmatprep.subr.mxu0 0.0
    %538 = vmatpush1.msra.mxu0 0.0
    %539 = vmatprep.subr.mxu0 0.0
    %540 = vmatpush1.msra.mxu0 0.0
    %541 = vmatprep.subr.mxu0 0.0
    %542 = vmatpush1.msra.mxu0 0.0
    %543 = vmatprep.subr.mxu0 0.0
    %544 = vmatpush1.msra.mxu0 0.0
    %545 = vmatprep.subr.mxu0 0.0
    %546 = vmatpush1.msra.mxu0 0.0
    %547 = vmatprep.subr.mxu0 0.0
    %548 = vmatpush1.msra.mxu0 0.0
    %549 = vmatprep.subr.mxu0 0.0
    %550 = vmatpush1.msra.mxu0 0.0
    %551 = vmatprep.subr.mxu0 0.0
    %552 = vmatpush1.msra.mxu0 0.0
    %553 = vmatprep.subr.mxu0 0.0
    %554 = vmatpush1.msra.mxu0 0.0
    %555 = vmatprep.subr.mxu0 0.0
    %556 = vmatpush1.msra.mxu0 0.0
    %557 = vmatprep.subr.mxu0 0.0
    %558 = vmatpush1.msra.mxu0 0.0
    %559 = vmatprep.subr.mxu0 0.0
    %560 = vmatpush1.msra.mxu0 0.0
    %561 = vmatprep.subr.mxu0 0.0
    %562 = vmatpush1.msra.mxu0 0.0
    %563 = vmatprep.subr.mxu0 0.0
    %564 = vmatpush1.msra.mxu0 0.0
    %565 = vmatprep.subr.mxu0 0.0
    %566 = vmatpush1.msra.mxu0 0.0
    %567 = vmatprep.subr.mxu0 0.0
    %568 = vmatpush1.msra.mxu0 0.0
    %569 = vmatprep.subr.mxu0 0.0
    %570 = vmatpush1.msra.mxu0 0.0
    %571 = vmatprep.subr.mxu0 0.0
    %572 = vmatpush1.msra.mxu0 0.0
    %573 = vmatprep.subr.mxu0 0.0
    %574 = vmatpush1.msra.mxu0 0.0
    %575 = vmatprep.subr.mxu0 0.0
    %576 = vmatpush1.msra.mxu0 0.0
    %577 = vmatprep.subr.mxu0 0.0
    %578 = vmatpush1.msra.mxu0 0.0
    %579 = vmatprep.subr.mxu0 0.0
    %580 = vmatpush1.msra.mxu0 0.0
    %581 = vmatprep.mubr.f32.mxu0 0.0
    %582 = vmatmul.mubr.f32.gmra.mrb[0].mxu0 %v231
    %v583 = vpop.f32.mrb[0].mxu0
    %v584 = vadd.f32 %v205, %v583
    %v585 = vpop.f32.mrb[0].mxu0
    %v586 = vadd.f32 %v209, %v585
    %587 = vdwg.mxu0
    %588 = vmatprep.subr.mxu0 %v64
    %589 = vmatpush1.msra.mxu0 %v63
    %590 = vmatprep.subr.mxu0 %v76
    %591 = vmatpush1.msra.mxu0 %v75
    %592 = vmatprep.subr.mxu0 %v88
    %593 = vmatpush1.msra.mxu0 %v87
    %594 = vmatprep.subr.mxu0 %v100
    %595 = vmatpush1.msra.mxu0 %v99
    %596 = vmatprep.subr.mxu0 0.0
    %597 = vmatpush1.msra.mxu0 0.0
    %598 = vmatprep.subr.mxu0 0.0
    %599 = vmatpush1.msra.mxu0 0.0
    %600 = vmatprep.subr.mxu0 0.0
    %601 = vmatpush1.msra.mxu0 0.0
    %602 = vmatprep.subr.mxu0 0.0
    %603 = vmatpush1.msra.mxu0 0.0
    %604 = vmatprep.subr.mxu0 0.0
    %605 = vmatpush1.msra.mxu0 0.0
    %606 = vmatprep.subr.mxu0 0.0
    %607 = vmatpush1.msra.mxu0 0.0
    %608 = vmatprep.subr.mxu0 0.0
    %609 = vmatpush1.msra.mxu0 0.0
    %610 = vmatprep.subr.mxu0 0.0
    %611 = vmatpush1.msra.mxu0 0.0
    %612 = vmatprep.subr.mxu0 0.0
    %613 = vmatpush1.msra.mxu0 0.0
    %614 = vmatprep.subr.mxu0 0.0
    %615 = vmatpush1.msra.mxu0 0.0
    %616 = vmatprep.subr.mxu0 0.0
    %617 = vmatpush1.msra.mxu0 0.0
    %618 = vmatprep.subr.mxu0 0.0
    %619 = vmatpush1.msra.mxu0 0.0
    %620 = vmatprep.subr.mxu0 0.0
    %621 = vmatpush1.msra.mxu0 0.0
    %622 = vmatprep.subr.mxu0 0.0
    %623 = vmatpush1.msra.mxu0 0.0
    %624 = vmatprep.subr.mxu0 0.0
    %625 = vmatpush1.msra.mxu0 0.0
    %626 = vmatprep.subr.mxu0 0.0
    %627 = vmatpush1.msra.mxu0 0.0
    %628 = vmatprep.subr.mxu0 0.0
    %629 = vmatpush1.msra.mxu0 0.0
    %630 = vmatprep.subr.mxu0 0.0
    %631 = vmatpush1.msra.mxu0 0.0
    %632 = vmatprep.subr.mxu0 0.0
    %633 = vmatpush1.msra.mxu0 0.0
    %634 = vmatprep.subr.mxu0 0.0
    %635 = vmatpush1.msra.mxu0 0.0
    %636 = vmatprep.subr.mxu0 0.0
    %637 = vmatpush1.msra.mxu0 0.0
    %638 = vmatprep.subr.mxu0 0.0
    %639 = vmatpush1.msra.mxu0 0.0
    %640 = vmatprep.subr.mxu0 0.0
    %641 = vmatpush1.msra.mxu0 0.0
    %642 = vmatprep.subr.mxu0 0.0
    %643 = vmatpush1.msra.mxu0 0.0
    %644 = vmatprep.subr.mxu0 0.0
    %645 = vmatpush1.msra.mxu0 0.0
    %646 = vmatprep.subr.mxu0 0.0
    %647 = vmatpush1.msra.mxu0 0.0
    %648 = vmatprep.subr.mxu0 0.0
    %649 = vmatpush1.msra.mxu0 0.0
    %650 = vmatprep.subr.mxu0 0.0
    %651 = vmatpush1.msra.mxu0 0.0
    %652 = vmatprep.mubr.f32.mxu0 0.0
    %653 = vmatmul.mubr.f32.gmra.mrb[0].mxu0 %v231
    %v654 = vpop.f32.mrb[0].mxu0
    %v655 = vadd.f32 %v213, %v654
    %v656 = vpop.f32.mrb[0].mxu0
    %v657 = vadd.f32 %v217, %v656
    %658 = vdwg.mxu0
    %v659 = vmul.f32 %v300, %v442
    %v660 = vmul.f32 %v302, %v444
    %v661 = vmul.f32 %v371, %v513
    %v662 = vmul.f32 %v373, %v515
    %v663 = vadd.f32 %v659, %v660
    %v664 = vadd.f32 %v663, %v661
    %v665 = vadd.f32 %v664, %v662
    %v666 = vrot.slane %v665, 4
    %v667 = vmax.f32 %v665, %v666
    %v668 = vrot.slane %v667, 2
    %v669 = vmax.f32 %v667, %v668
    %v670 = vrot.slane %v669, 1
    %v671 = vmax.f32 %v669, %v670
    %v672 = vsub.f32 %v665, %v671
    %v673 = vmul.f32 %v672, 1.442695
    %v674 = vpow.pop %v673
    %v675 = vrot.slane %v674, 4
    %v676 = vadd.f32 %v674, %v675
    %v677 = vrot.slane %v676, 2
    %v678 = vadd.f32 %v676, %v677
    %v679 = vrot.slane %v678, 1
    %v680 = vadd.f32 %v678, %v679
    %v681 = vrcp.pop %v680
    %v682 = vmul.f32 %v674, %v681
    %v683 = vmul.f32 %v682, %v584
    %v684 = vmul.f32 %v682, %v586
    %v685 = vmul.f32 %v682, %v655
    %v686 = vmul.f32 %v682, %v657
    %v688 = vlaneseq
    %v689 = vshrl.u32 %v688, 7
    %v690 = vsub.s32 0, %v689
    %v691 = vrot.slane %v167, %v690
    %693 = vmatprep.subr.mxu0 0.0
    %694 = vmatpush1.msra.mxu0 %v103
    %695 = vmatprep.subr.mxu0 0.0
    %696 = vmatpush1.msra.mxu0 %v104
    %697 = vmatprep.subr.mxu0 0.0
    %698 = vmatpush1.msra.mxu0 %v105
    %699 = vmatprep.subr.mxu0 0.0
    %700 = vmatpush1.msra.mxu0 %v106
    %701 = vmatprep.subr.mxu0 0.0
    %702 = vmatpush1.msra.mxu0 %v107
    %703 = vmatprep.subr.mxu0 0.0
    %704 = vmatpush1.msra.mxu0 %v108
    %705 = vmatprep.subr.mxu0 0.0
    %706 = vmatpush1.msra.mxu0 %v109
    %707 = vmatprep.subr.mxu0 0.0
    %708 = vmatpush1.msra.mxu0 %v110
    %709 = vmatprep.subr.mxu0 0.0
    %710 = vmatpush1.msra.mxu0 %v111
    %711 = vmatprep.subr.mxu0 0.0
    %712 = vmatpush1.msra.mxu0 %v112
    %713 = vmatprep.subr.mxu0 0.0
    %714 = vmatpush1.msra.mxu0 %v113
    %715 = vmatprep.subr.mxu0 0.0
    %716 = vmatpush1.msra.mxu0 %v114
    %717 = vmatprep.subr.mxu0 0.0
    %718 = vmatpush1.msra.mxu0 %v115
    %719 = vmatprep.subr.mxu0 0.0
    %720 = vmatpush1.msra.mxu0 %v116
    %721 = vmatprep.subr.mxu0 0.0
    %722 = vmatpush1.msra.mxu0 %v117
    %723 = vmatprep.subr.mxu0 0.0
    %724 = vmatpush1.msra.mxu0 %v118
    %725 = vmatprep.subr.mxu0 0.0
    %726 = vmatpush1.msra.mxu0 %v119
    %727 = vmatprep.subr.mxu0 0.0
    %728 = vmatpush1.msra.mxu0 %v120
    %729 = vmatprep.subr.mxu0 0.0
    %730 = vmatpush1.msra.mxu0 %v121
    %731 = vmatprep.subr.mxu0 0.0
    %732 = vmatpush1.msra.mxu0 %v122
    %733 = vmatprep.subr.mxu0 0.0
    %734 = vmatpush1.msra.mxu0 %v123
    %735 = vmatprep.subr.mxu0 0.0
    %736 = vmatpush1.msra.mxu0 %v124
    %737 = vmatprep.subr.mxu0 0.0
    %738 = vmatpush1.msra.mxu0 %v125
    %739 = vmatprep.subr.mxu0 0.0
    %740 = vmatpush1.msra.mxu0 %v126
    %741 = vmatprep.subr.mxu0 0.0
    %742 = vmatpush1.msra.mxu0 %v127
    %743 = vmatprep.subr.mxu0 0.0
    %744 = vmatpush1.msra.mxu0 %v128
    %745 = vmatprep.subr.mxu0 0.0
    %746 = vmatpush1.msra.mxu0 %v129
    %747 = vmatprep.subr.mxu0 0.0
    %748 = vmatpush1.msra.mxu0 %v130
    %749 = vmatprep.subr.mxu0 0.0
    %750 = vmatpush1.msra.mxu0 %v131
    %751 = vmatprep.subr.mxu0 0.0
    %752 = vmatpush1.msra.mxu0 %v132
    %753 = vmatprep.subr.mxu0 0.0
    %754 = vmatpush1.msra.mxu0 %v133
    %755 = vmatprep.subr.mxu0 0.0
    %756 = vmatpush1.msra.mxu0 %v134
    %757 = vmatprep.mubr.f32.mxu0 %v684
    %758 = vmatmul.mubr.f32.gmra.mrb[0].mxu0 %v683
    %v759 = vpop.f32.mrb[0].mxu0
    %v760 = vadd.f32 %v691, %v759
    %v761 = vpop.f32.mrb[0].mxu0
    %762 = vdwg.mxu0
    %763 = vmatprep.subr.mxu0 0.0
    %764 = vmatpush1.msra.mxu0 %v135
    %765 = vmatprep.subr.mxu0 0.0
    %766 = vmatpush1.msra.mxu0 %v136
    %767 = vmatprep.subr.mxu0 0.0
    %768 = vmatpush1.msra.mxu0 %v137
    %769 = vmatprep.subr.mxu0 0.0
    %770 = vmatpush1.msra.mxu0 %v138
    %771 = vmatprep.subr.mxu0 0.0
    %772 = vmatpush1.msra.mxu0 %v139
    %773 = vmatprep.subr.mxu0 0.0
    %774 = vmatpush1.msra.mxu0 %v140
    %775 = vmatprep.subr.mxu0 0.0
    %776 = vmatpush1.msra.mxu0 %v141
    %777 = vmatprep.subr.mxu0 0.0
    %778 = vmatpush1.msra.mxu0 %v142
    %779 = vmatprep.subr.mxu0 0.0
    %780 = vmatpush1.msra.mxu0 %v143
    %781 = vmatprep.subr.mxu0 0.0
    %782 = vmatpush1.msra.mxu0 %v144
    %783 = vmatprep.subr.mxu0 0.0
    %784 = vmatpush1.msra.mxu0 %v145
    %785 = vmatprep.subr.mxu0 0.0
    %786 = vmatpush1.msra.mxu0 %v146
    %787 = vmatprep.subr.mxu0 0.0
    %788 = vmatpush1.msra.mxu0 %v147
    %789 = vmatprep.subr.mxu0 0.0
    %790 = vmatpush1.msra.mxu0 %v148
    %791 = vmatprep.subr.mxu0 0.0
    %792 = vmatpush1.msra.mxu0 %v149
    %793 = vmatprep.subr.mxu0 0.0
    %794 = vmatpush1.msra.mxu0 %v150
    %795 = vmatprep.subr.mxu0 0.0
    %796 = vmatpush1.msra.mxu0 %v151
    %797 = vmatprep.subr.mxu0 0.0
    %798 = vmatpush1.msra.mxu0 %v152
    %799 = vmatprep.subr.mxu0 0.0
    %800 = vmatpush1.msra.mxu0 %v153
    %801 = vmatprep.subr.mxu0 0.0
    %802 = vmatpush1.msra.mxu0 %v154
    %803 = vmatprep.subr.mxu0 0.0
    %804 = vmatpush1.msra.mxu0 %v155
    %805 = vmatprep.subr.mxu0 0.0
    %806 = vmatpush1.msra.mxu0 %v156
    %807 = vmatprep.subr.mxu0 0.0
    %808 = vmatpush1.msra.mxu0 %v157
    %809 = vmatprep.subr.mxu0 0.0
    %810 = vmatpush1.msra.mxu0 %v158
    %811 = vmatprep.subr.mxu0 0.0
    %812 = vmatpush1.msra.mxu0 %v159
    %813 = vmatprep.subr.mxu0 0.0
    %814 = vmatpush1.msra.mxu0 %v160
    %815 = vmatprep.subr.mxu0 0.0
    %816 = vmatpush1.msra.mxu0 %v161
    %817 = vmatprep.subr.mxu0 0.0
    %818 = vmatpush1.msra.mxu0 %v162
    %819 = vmatprep.subr.mxu0 0.0
    %820 = vmatpush1.msra.mxu0 %v163
    %821 = vmatprep.subr.mxu0 0.0
    %822 = vmatpush1.msra.mxu0 %v164
    %823 = vmatprep.subr.mxu0 0.0
    %824 = vmatpush1.msra.mxu0 %v165
    %825 = vmatprep.subr.mxu0 0.0
    %826 = vmatpush1.msra.mxu0 %v166
    %827 = vmatprep.mubr.f32.mxu0 %v686
    %828 = vmatmul.mubr.f32.gmra.mrb[0].mxu0 %v685
    %v829 = vpop.f32.mrb[0].mxu0
    %v830 = vadd.f32 %v760, %v829
    %v831 = vpop.f32.mrb[0].mxu0
    %832 = vdwg.mxu0
    %v833 = vsel %vm31, %v830, 0.0
    %834 = vadd.xlane.f32.xlu0 %v833
    %v835 = vpop.xlane.xlu0 %834
    %v836 = vmul.f32 %v835, %v35
    %v837 = vsub.f32 %v830, %v836
    %v838 = vmul.f32 %v837, %v837
    %v839 = vsel %vm31, %v838, 0.0
    %840 = vadd.xlane.f32.xlu0 %v839
    %v841 = vpop.xlane.xlu0 %840
    %v842 = vmul.f32 %v841, 0.032258064
    %v843 = vrsqrt.pop %v842
    %v844 = vmul.f32 %v842, %v843
    %vm845 = vcmp.eq.f32.partialorder %v842, inf
    %v846 = vsel %vm845, %v842, %v844
    %vm847 = vcmp.eq.f32.partialorder %v842, 0.0
    %v848 = vand.u32 %v842, 2147483648
    %v849 = vsel %vm847, %v848, %v846
    %v850 = vadd.f32 %v849, 1e-06
    %v851 = vrcp.pop %v850
    %v852 = vmul.f32 %v837, %v851
    %v853 = vld [vmem:[%s2] sm:$0xff]
    %v854 = vld [vmem:[%s2 + $0x8] sm:$0xff]
    %v855 = vld [vmem:[%s2 + $0x10] sm:$0xff]
    %v856 = vld [vmem:[%s2 + $0x18] sm:$0xff]
    %v857 = vld [vmem:[%s2 + $0x20] sm:$0xff]
    %v858 = vld [vmem:[%s2 + $0x28] sm:$0xff]
    %v859 = vld [vmem:[%s2 + $0x30] sm:$0xff]
    %v860 = vld [vmem:[%s2 + $0x38] sm:$0xff]
    %v861 = vld [vmem:[%s2 + $0x40] sm:$0xff]
    %v862 = vld [vmem:[%s2 + $0x48] sm:$0xff]
    %v863 = vld [vmem:[%s2 + $0x50] sm:$0xff]
    %v864 = vld [vmem:[%s2 + $0x58] sm:$0xff]
    %v865 = vld [vmem:[%s2 + $0x60] sm:$0xff]
    %v866 = vld [vmem:[%s2 + $0x68] sm:$0xff]
    %v867 = vld [vmem:[%s2 + $0x70] sm:$0xff]
    %v868 = vld [vmem:[%s2 + $0x78] sm:$0xff]
    %v869 = vld [vmem:[%s2 + $0x80] sm:$0xff]
    %v870 = vld [vmem:[%s2 + $0x88] sm:$0xff]
    %v871 = vld [vmem:[%s2 + $0x90] sm:$0xff]
    %v872 = vld [vmem:[%s2 + $0x98] sm:$0xff]
    %v873 = vld [vmem:[%s2 + $0xa0] sm:$0xff]
    %v874 = vld [vmem:[%s2 + $0xa8] sm:$0xff]
    %v875 = vld [vmem:[%s2 + $0xb0] sm:$0xff]
    %v876 = vld [vmem:[%s2 + $0xb8] sm:$0xff]
    %v877 = vld [vmem:[%s2 + $0xc0] sm:$0xff]
    %v878 = vld [vmem:[%s2 + $0xc8] sm:$0xff]
    %v879 = vld [vmem:[%s2 + $0xd0] sm:$0xff]
    %v880 = vld [vmem:[%s2 + $0xd8] sm:$0xff]
    %v881 = vld [vmem:[%s2 + $0xe0] sm:$0xff]
    %v882 = vld [vmem:[%s2 + $0xe8] sm:$0xff]
    %v883 = vld [vmem:[%s2 + $0xf0] sm:$0xff]
    %v884 = vld [vmem:[%s2 + $0xf8] sm:$0xff]
    %v885 = vld [vmem:[%s2 + $0x100] sm:$0xff]
    %v886 = vld [vmem:[%s2 + $0x108] sm:$0xff]
    %v887 = vld [vmem:[%s2 + $0x110] sm:$0xff]
    %v888 = vld [vmem:[%s2 + $0x118] sm:$0xff]
    %v889 = vld [vmem:[%s2 + $0x120] sm:$0xff]
    %v890 = vld [vmem:[%s2 + $0x128] sm:$0xff]
    %v891 = vld [vmem:[%s2 + $0x130] sm:$0xff]
    %v892 = vld [vmem:[%s2 + $0x138] sm:$0xff]
    %v893 = vld [vmem:[%s2 + $0x140] sm:$0xff]
    %v894 = vld [vmem:[%s2 + $0x148] sm:$0xff]
    %v895 = vld [vmem:[%s2 + $0x150] sm:$0xff]
    %v896 = vld [vmem:[%s2 + $0x158] sm:$0xff]
    %v897 = vld [vmem:[%s2 + $0x160] sm:$0xff]
    %v898 = vld [vmem:[%s2 + $0x168] sm:$0xff]
    %v899 = vld [vmem:[%s2 + $0x170] sm:$0xff]
    %v900 = vld [vmem:[%s2 + $0x178] sm:$0xff]
    %s901 = scalar_lea.vmem %s3, 12
    %v902 = vld [vmem:[%s901] sm:$0xff]
    %v903 = vld [vmem:[%s901 + $0x8] sm:$0xf]
    %s904 = scalar_lea.vmem %s4, 512
    %v905 = vld [vmem:[%s904] sm:$0xff]
    %v906 = vld [vmem:[%s904 + $0x8] sm:$0xff]
    %v907 = vld [vmem:[%s904 + $0x10] sm:$0xff]
    %v908 = vld [vmem:[%s904 + $0x18] sm:$0xff]
    %v909 = vld [vmem:[%s904 + $0x20] sm:$0xff]
    %v910 = vld [vmem:[%s904 + $0x28] sm:$0xff]
    %v911 = vld [vmem:[%s904 + $0x30] sm:$0xff]
    %v912 = vld [vmem:[%s904 + $0x38] sm:$0xff]
    %v913 = vld [vmem:[%s904 + $0x40] sm:$0xff]
    %v914 = vld [vmem:[%s904 + $0x48] sm:$0xff]
    %v915 = vld [vmem:[%s904 + $0x50] sm:$0xff]
    %v916 = vld [vmem:[%s904 + $0x58] sm:$0xff]
    %v917 = vld [vmem:[%s904 + $0x60] sm:$0xff]
    %v918 = vld [vmem:[%s904 + $0x68] sm:$0xff]
    %v919 = vld [vmem:[%s904 + $0x70] sm:$0xff]
    %v920 = vld [vmem:[%s904 + $0x78] sm:$0xff]
    %v921 = vld [vmem:[%s904 + $0x80] sm:$0xff]
    %v922 = vld [vmem:[%s904 + $0x88] sm:$0xff]
    %v923 = vld [vmem:[%s904 + $0x90] sm:$0xff]
    %v924 = vld [vmem:[%s904 + $0x98] sm:$0xff]
    %v925 = vld [vmem:[%s904 + $0xa0] sm:$0xff]
    %v926 = vld [vmem:[%s904 + $0xa8] sm:$0xff]
    %v927 = vld [vmem:[%s904 + $0xb0] sm:$0xff]
    %v928 = vld [vmem:[%s904 + $0xb8] sm:$0xff]
    %v929 = vld [vmem:[%s904 + $0xc0] sm:$0xff]
    %v930 = vld [vmem:[%s904 + $0xc8] sm:$0xff]
    %v931 = vld [vmem:[%s904 + $0xd0] sm:$0xff]
    %v932 = vld [vmem:[%s904 + $0xd8] sm:$0xff]
    %v933 = vld [vmem:[%s904 + $0xe0] sm:$0xff]
    %v934 = vld [vmem:[%s904 + $0xe8] sm:$0xff]
    %v935 = vld [vmem:[%s904 + $0xf0] sm:$0xff]
    %v936 = vld [vmem:[%s904 + $0xf8] sm:$0xff]
    %v937 = vld [vmem:[%s904 + $0x100] sm:$0xff]
    %v938 = vld [vmem:[%s904 + $0x108] sm:$0xff]
    %v939 = vld [vmem:[%s904 + $0x110] sm:$0xff]
    %v940 = vld [vmem:[%s904 + $0x118] sm:$0xff]
    %v941 = vld [vmem:[%s904 + $0x120] sm:$0xff]
    %v942 = vld [vmem:[%s904 + $0x128] sm:$0xff]
    %v943 = vld [vmem:[%s904 + $0x130] sm:$0xff]
    %v944 = vld [vmem:[%s904 + $0x138] sm:$0xff]
    %v945 = vld [vmem:[%s904 + $0x140] sm:$0xff]
    %v946 = vld [vmem:[%s904 + $0x148] sm:$0xff]
    %v947 = vld [vmem:[%s904 + $0x150] sm:$0xff]
    %v948 = vld [vmem:[%s904 + $0x158] sm:$0xff]
    %v949 = vld [vmem:[%s904 + $0x160] sm:$0xff]
    %v950 = vld [vmem:[%s904 + $0x168] sm:$0xff]
    %v951 = vld [vmem:[%s904 + $0x170] sm:$0xff]
    %v952 = vld [vmem:[%s904 + $0x178] sm:$0xff]
    %v953 = vld [vmem:[%s904 + $0x180] sm:$0xff]
    %v954 = vld [vmem:[%s904 + $0x188] sm:$0xff]
    %v955 = vld [vmem:[%s904 + $0x190] sm:$0xff]
    %v956 = vld [vmem:[%s904 + $0x198] sm:$0xff]
    %v957 = vld [vmem:[%s904 + $0x1a0] sm:$0xff]
    %v958 = vld [vmem:[%s904 + $0x1a8] sm:$0xff]
    %v959 = vld [vmem:[%s904 + $0x1b0] sm:$0xff]
    %v960 = vld [vmem:[%s904 + $0x1b8] sm:$0xff]
    %v961 = vld [vmem:[%s904 + $0x1c0] sm:$0xff]
    %v962 = vld [vmem:[%s904 + $0x1c8] sm:$0xff]
    %v963 = vld [vmem:[%s904 + $0x1d0] sm:$0xff]
    %v964 = vld [vmem:[%s904 + $0x1d8] sm:$0xff]
    %v965 = vld [vmem:[%s904 + $0x1e0] sm:$0xff]
    %v966 = vld [vmem:[%s904 + $0x1e8] sm:$0xff]
    %v967 = vld [vmem:[%s904 + $0x1f0] sm:$0xff]
    %v968 = vld [vmem:[%s904 + $0x1f8] sm:$0xff]
    %s969 = scalar_lea.vmem %s5, 1
    %v970 = vld [vmem:[%s969] sm:$0x1]
    %v973 = vlaneseq
    %v974 = vshrl.u32 %v973, 7
    %v975 = vsub.s32 0, %v974
    %v976 = vrot.slane %v902, %v975
    %v977 = vlaneseq
    %v978 = vshrl.u32 %v977, 7
    %v979 = vsub.s32 1, %v978
    %v980 = vrot.slane %v902, %v979
    %v981 = vlaneseq
    %v982 = vshrl.u32 %v981, 7
    %v983 = vsub.s32 2, %v982
    %v984 = vrot.slane %v902, %v983
    %v985 = vlaneseq
    %v986 = vshrl.u32 %v985, 7
    %v987 = vsub.s32 3, %v986
    %v988 = vrot.slane %v902, %v987
    %v989 = vlaneseq
    %v990 = vshrl.u32 %v989, 7
    %v991 = vsub.s32 4, %v990
    %v992 = vrot.slane %v902, %v991
    %v993 = vlaneseq
    %v994 = vshrl.u32 %v993, 7
    %v995 = vsub.s32 5, %v994
    %v996 = vrot.slane %v902, %v995
    %v997 = vlaneseq
    %v998 = vshrl.u32 %v997, 7
    %v999 = vsub.s32 6, %v998
    %v1000 = vrot.slane %v902, %v999
    %v1001 = vlaneseq
    %v1002 = vshrl.u32 %v1001, 7
    %v1003 = vsub.s32 7, %v1002
    %v1004 = vrot.slane %v902, %v1003
    %v1005 = vlaneseq
    %v1006 = vshrl.u32 %v1005, 7
    %v1007 = vsub.s32 0, %v1006
    %v1008 = vrot.slane %v903, %v1007
    %v1009 = vlaneseq
    %v1010 = vshrl.u32 %v1009, 7
    %v1011 = vsub.s32 1, %v1010
    %v1012 = vrot.slane %v903, %v1011
    %v1013 = vlaneseq
    %v1014 = vshrl.u32 %v1013, 7
    %v1015 = vsub.s32 2, %v1014
    %v1016 = vrot.slane %v903, %v1015
    %v1017 = vlaneseq
    %v1018 = vshrl.u32 %v1017, 7
    %v1019 = vsub.s32 3, %v1018
    %v1020 = vrot.slane %v903, %v1019
    %v1034 = vsel %vm31, %v852, 0
    %1036 = vmatprep.subr.mxu0 %v854
    %1037 = vmatpush1.msra.mxu0 %v853
    %1038 = vmatprep.subr.mxu0 %v866
    %1039 = vmatpush1.msra.mxu0 %v865
    %1040 = vmatprep.subr.mxu0 %v878
    %1041 = vmatpush1.msra.mxu0 %v877
    %1042 = vmatprep.subr.mxu0 %v890
    %1043 = vmatpush1.msra.mxu0 %v889
    %1044 = vmatprep.subr.mxu0 0.0
    %1045 = vmatpush1.msra.mxu0 0.0
    %1046 = vmatprep.subr.mxu0 0.0
    %1047 = vmatpush1.msra.mxu0 0.0
    %1048 = vmatprep.subr.mxu0 0.0
    %1049 = vmatpush1.msra.mxu0 0.0
    %1050 = vmatprep.subr.mxu0 0.0
    %1051 = vmatpush1.msra.mxu0 0.0
    %1052 = vmatprep.subr.mxu0 0.0
    %1053 = vmatpush1.msra.mxu0 0.0
    %1054 = vmatprep.subr.mxu0 0.0
    %1055 = vmatpush1.msra.mxu0 0.0
    %1056 = vmatprep.subr.mxu0 0.0
    %1057 = vmatpush1.msra.mxu0 0.0
    %1058 = vmatprep.subr.mxu0 0.0
    %1059 = vmatpush1.msra.mxu0 0.0
    %1060 = vmatprep.subr.mxu0 0.0
    %1061 = vmatpush1.msra.mxu0 0.0
    %1062 = vmatprep.subr.mxu0 0.0
    %1063 = vmatpush1.msra.mxu0 0.0
    %1064 = vmatprep.subr.mxu0 0.0
    %1065 = vmatpush1.msra.mxu0 0.0
    %1066 = vmatprep.subr.mxu0 0.0
    %1067 = vmatpush1.msra.mxu0 0.0
    %1068 = vmatprep.subr.mxu0 0.0
    %1069 = vmatpush1.msra.mxu0 0.0
    %1070 = vmatprep.subr.mxu0 0.0
    %1071 = vmatpush1.msra.mxu0 0.0
    %1072 = vmatprep.subr.mxu0 0.0
    %1073 = vmatpush1.msra.mxu0 0.0
    %1074 = vmatprep.subr.mxu0 0.0
    %1075 = vmatpush1.msra.mxu0 0.0
    %1076 = vmatprep.subr.mxu0 0.0
    %1077 = vmatpush1.msra.mxu0 0.0
    %1078 = vmatprep.subr.mxu0 0.0
    %1079 = vmatpush1.msra.mxu0 0.0
    %1080 = vmatprep.subr.mxu0 0.0
    %1081 = vmatpush1.msra.mxu0 0.0
    %1082 = vmatprep.subr.mxu0 0.0
    %1083 = vmatpush1.msra.mxu0 0.0
    %1084 = vmatprep.subr.mxu0 0.0
    %1085 = vmatpush1.msra.mxu0 0.0
    %1086 = vmatprep.subr.mxu0 0.0
    %1087 = vmatpush1.msra.mxu0 0.0
    %1088 = vmatprep.subr.mxu0 0.0
    %1089 = vmatpush1.msra.mxu0 0.0
    %1090 = vmatprep.subr.mxu0 0.0
    %1091 = vmatpush1.msra.mxu0 0.0
    %1092 = vmatprep.subr.mxu0 0.0
    %1093 = vmatpush1.msra.mxu0 0.0
    %1094 = vmatprep.subr.mxu0 0.0
    %1095 = vmatpush1.msra.mxu0 0.0
    %1096 = vmatprep.subr.mxu0 0.0
    %1097 = vmatpush1.msra.mxu0 0.0
    %1098 = vmatprep.subr.mxu0 0.0
    %1099 = vmatpush1.msra.mxu0 0.0
    %1100 = vmatprep.mubr.f32.mxu0 0.0
    %1101 = vmatmul.mubr.f32.gmra.mrb[0].mxu0 %v1034
    %v1102 = vpop.f32.mrb[0].mxu0
    %v1103 = vadd.f32 %v976, %v1102
    %v1104 = vpop.f32.mrb[0].mxu0
    %v1105 = vadd.f32 %v980, %v1104
    %1106 = vdwg.mxu0
    %1107 = vmatprep.subr.mxu0 %v856
    %1108 = vmatpush1.msra.mxu0 %v855
    %1109 = vmatprep.subr.mxu0 %v868
    %1110 = vmatpush1.msra.mxu0 %v867
    %1111 = vmatprep.subr.mxu0 %v880
    %1112 = vmatpush1.msra.mxu0 %v879
    %1113 = vmatprep.subr.mxu0 %v892
    %1114 = vmatpush1.msra.mxu0 %v891
    %1115 = vmatprep.subr.mxu0 0.0
    %1116 = vmatpush1.msra.mxu0 0.0
    %1117 = vmatprep.subr.mxu0 0.0
    %1118 = vmatpush1.msra.mxu0 0.0
    %1119 = vmatprep.subr.mxu0 0.0
    %1120 = vmatpush1.msra.mxu0 0.0
    %1121 = vmatprep.subr.mxu0 0.0
    %1122 = vmatpush1.msra.mxu0 0.0
    %1123 = vmatprep.subr.mxu0 0.0
    %1124 = vmatpush1.msra.mxu0 0.0
    %1125 = vmatprep.subr.mxu0 0.0
    %1126 = vmatpush1.msra.mxu0 0.0
    %1127 = vmatprep.subr.mxu0 0.0
    %1128 = vmatpush1.msra.mxu0 0.0
    %1129 = vmatprep.subr.mxu0 0.0
    %1130 = vmatpush1.msra.mxu0 0.0
    %1131 = vmatprep.subr.mxu0 0.0
    %1132 = vmatpush1.msra.mxu0 0.0
    %1133 = vmatprep.subr.mxu0 0.0
    %1134 = vmatpush1.msra.mxu0 0.0
    %1135 = vmatprep.subr.mxu0 0.0
    %1136 = vmatpush1.msra.mxu0 0.0
    %1137 = vmatprep.subr.mxu0 0.0
    %1138 = vmatpush1.msra.mxu0 0.0
    %1139 = vmatprep.subr.mxu0 0.0
    %1140 = vmatpush1.msra.mxu0 0.0
    %1141 = vmatprep.subr.mxu0 0.0
    %1142 = vmatpush1.msra.mxu0 0.0
    %1143 = vmatprep.subr.mxu0 0.0
    %1144 = vmatpush1.msra.mxu0 0.0
    %1145 = vmatprep.subr.mxu0 0.0
    %1146 = vmatpush1.msra.mxu0 0.0
    %1147 = vmatprep.subr.mxu0 0.0
    %1148 = vmatpush1.msra.mxu0 0.0
    %1149 = vmatprep.subr.mxu0 0.0
    %1150 = vmatpush1.msra.mxu0 0.0
    %1151 = vmatprep.subr.mxu0 0.0
    %1152 = vmatpush1.msra.mxu0 0.0
    %1153 = vmatprep.subr.mxu0 0.0
    %1154 = vmatpush1.msra.mxu0 0.0
    %1155 = vmatprep.subr.mxu0 0.0
    %1156 = vmatpush1.msra.mxu0 0.0
    %1157 = vmatprep.subr.mxu0 0.0
    %1158 = vmatpush1.msra.mxu0 0.0
    %1159 = vmatprep.subr.mxu0 0.0
    %1160 = vmatpush1.msra.mxu0 0.0
    %1161 = vmatprep.subr.mxu0 0.0
    %1162 = vmatpush1.msra.mxu0 0.0
    %1163 = vmatprep.subr.mxu0 0.0
    %1164 = vmatpush1.msra.mxu0 0.0
    %1165 = vmatprep.subr.mxu0 0.0
    %1166 = vmatpush1.msra.mxu0 0.0
    %1167 = vmatprep.subr.mxu0 0.0
    %1168 = vmatpush1.msra.mxu0 0.0
    %1169 = vmatprep.subr.mxu0 0.0
    %1170 = vmatpush1.msra.mxu0 0.0
    %1171 = vmatprep.mubr.f32.mxu0 0.0
    %1172 = vmatmul.mubr.f32.gmra.mrb[0].mxu0 %v1034
    %v1173 = vpop.f32.mrb[0].mxu0
    %v1174 = vadd.f32 %v984, %v1173
    %v1175 = vpop.f32.mrb[0].mxu0
    %v1176 = vadd.f32 %v988, %v1175
    %1177 = vdwg.mxu0
    %1178 = vmatprep.subr.mxu0 %v858
    %1179 = vmatpush1.msra.mxu0 %v857
    %1180 = vmatprep.subr.mxu0 %v870
    %1181 = vmatpush1.msra.mxu0 %v869
    %1182 = vmatprep.subr.mxu0 %v882
    %1183 = vmatpush1.msra.mxu0 %v881
    %1184 = vmatprep.subr.mxu0 %v894
    %1185 = vmatpush1.msra.mxu0 %v893
    %1186 = vmatprep.subr.mxu0 0.0
    %1187 = vmatpush1.msra.mxu0 0.0
    %1188 = vmatprep.subr.mxu0 0.0
    %1189 = vmatpush1.msra.mxu0 0.0
    %1190 = vmatprep.subr.mxu0 0.0
    %1191 = vmatpush1.msra.mxu0 0.0
    %1192 = vmatprep.subr.mxu0 0.0
    %1193 = vmatpush1.msra.mxu0 0.0
    %1194 = vmatprep.subr.mxu0 0.0
    %1195 = vmatpush1.msra.mxu0 0.0
    %1196 = vmatprep.subr.mxu0 0.0
    %1197 = vmatpush1.msra.mxu0 0.0
    %1198 = vmatprep.subr.mxu0 0.0
    %1199 = vmatpush1.msra.mxu0 0.0
    %1200 = vmatprep.subr.mxu0 0.0
    %1201 = vmatpush1.msra.mxu0 0.0
    %1202 = vmatprep.subr.mxu0 0.0
    %1203 = vmatpush1.msra.mxu0 0.0
    %1204 = vmatprep.subr.mxu0 0.0
    %1205 = vmatpush1.msra.mxu0 0.0
    %1206 = vmatprep.subr.mxu0 0.0
    %1207 = vmatpush1.msra.mxu0 0.0
    %1208 = vmatprep.subr.mxu0 0.0
    %1209 = vmatpush1.msra.mxu0 0.0
    %1210 = vmatprep.subr.mxu0 0.0
    %1211 = vmatpush1.msra.mxu0 0.0
    %1212 = vmatprep.subr.mxu0 0.0
    %1213 = vmatpush1.msra.mxu0 0.0
    %1214 = vmatprep.subr.mxu0 0.0
    %1215 = vmatpush1.msra.mxu0 0.0
    %1216 = vmatprep.subr.mxu0 0.0
    %1217 = vmatpush1.msra.mxu0 0.0
    %1218 = vmatprep.subr.mxu0 0.0
    %1219 = vmatpush1.msra.mxu0 0.0
    %1220 = vmatprep.subr.mxu0 0.0
    %1221 = vmatpush1.msra.mxu0 0.0
    %1222 = vmatprep.subr.mxu0 0.0
    %1223 = vmatpush1.msra.mxu0 0.0
    %1224 = vmatprep.subr.mxu0 0.0
    %1225 = vmatpush1.msra.mxu0 0.0
    %1226 = vmatprep.subr.mxu0 0.0
    %1227 = vmatpush1.msra.mxu0 0.0
    %1228 = vmatprep.subr.mxu0 0.0
    %1229 = vmatpush1.msra.mxu0 0.0
    %1230 = vmatprep.subr.mxu0 0.0
    %1231 = vmatpush1.msra.mxu0 0.0
    %1232 = vmatprep.subr.mxu0 0.0
    %1233 = vmatpush1.msra.mxu0 0.0
    %1234 = vmatprep.subr.mxu0 0.0
    %1235 = vmatpush1.msra.mxu0 0.0
    %1236 = vmatprep.subr.mxu0 0.0
    %1237 = vmatpush1.msra.mxu0 0.0
    %1238 = vmatprep.subr.mxu0 0.0
    %1239 = vmatpush1.msra.mxu0 0.0
    %1240 = vmatprep.subr.mxu0 0.0
    %1241 = vmatpush1.msra.mxu0 0.0
    %1242 = vmatprep.mubr.f32.mxu0 0.0
    %1243 = vmatmul.mubr.f32.gmra.mrb[0].mxu0 %v1034
    %v1244 = vpop.f32.mrb[0].mxu0
    %v1245 = vadd.f32 %v992, %v1244
    %v1246 = vpop.f32.mrb[0].mxu0
    %v1247 = vadd.f32 %v996, %v1246
    %1248 = vdwg.mxu0
    %1249 = vmatprep.subr.mxu0 %v860
    %1250 = vmatpush1.msra.mxu0 %v859
    %1251 = vmatprep.subr.mxu0 %v872
    %1252 = vmatpush1.msra.mxu0 %v871
    %1253 = vmatprep.subr.mxu0 %v884
    %1254 = vmatpush1.msra.mxu0 %v883
    %1255 = vmatprep.subr.mxu0 %v896
    %1256 = vmatpush1.msra.mxu0 %v895
    %1257 = vmatprep.subr.mxu0 0.0
    %1258 = vmatpush1.msra.mxu0 0.0
    %1259 = vmatprep.subr.mxu0 0.0
    %1260 = vmatpush1.msra.mxu0 0.0
    %1261 = vmatprep.subr.mxu0 0.0
    %1262 = vmatpush1.msra.mxu0 0.0
    %1263 = vmatprep.subr.mxu0 0.0
    %1264 = vmatpush1.msra.mxu0 0.0
    %1265 = vmatprep.subr.mxu0 0.0
    %1266 = vmatpush1.msra.mxu0 0.0
    %1267 = vmatprep.subr.mxu0 0.0
    %1268 = vmatpush1.msra.mxu0 0.0
    %1269 = vmatprep.subr.mxu0 0.0
    %1270 = vmatpush1.msra.mxu0 0.0
    %1271 = vmatprep.subr.mxu0 0.0
    %1272 = vmatpush1.msra.mxu0 0.0
    %1273 = vmatprep.subr.mxu0 0.0
    %1274 = vmatpush1.msra.mxu0 0.0
    %1275 = vmatprep.subr.mxu0 0.0
    %1276 = vmatpush1.msra.mxu0 0.0
    %1277 = vmatprep.subr.mxu0 0.0
    %1278 = vmatpush1.msra.mxu0 0.0
    %1279 = vmatprep.subr.mxu0 0.0
    %1280 = vmatpush1.msra.mxu0 0.0
    %1281 = vmatprep.subr.mxu0 0.0
    %1282 = vmatpush1.msra.mxu0 0.0
    %1283 = vmatprep.subr.mxu0 0.0
    %1284 = vmatpush1.msra.mxu0 0.0
    %1285 = vmatprep.subr.mxu0 0.0
    %1286 = vmatpush1.msra.mxu0 0.0
    %1287 = vmatprep.subr.mxu0 0.0
    %1288 = vmatpush1.msra.mxu0 0.0
    %1289 = vmatprep.subr.mxu0 0.0
    %1290 = vmatpush1.msra.mxu0 0.0
    %1291 = vmatprep.subr.mxu0 0.0
    %1292 = vmatpush1.msra.mxu0 0.0
    %1293 = vmatprep.subr.mxu0 0.0
    %1294 = vmatpush1.msra.mxu0 0.0
    %1295 = vmatprep.subr.mxu0 0.0
    %1296 = vmatpush1.msra.mxu0 0.0
    %1297 = vmatprep.subr.mxu0 0.0
    %1298 = vmatpush1.msra.mxu0 0.0
    %1299 = vmatprep.subr.mxu0 0.0
    %1300 = vmatpush1.msra.mxu0 0.0
    %1301 = vmatprep.subr.mxu0 0.0
    %1302 = vmatpush1.msra.mxu0 0.0
    %1303 = vmatprep.subr.mxu0 0.0
    %1304 = vmatpush1.msra.mxu0 0.0
    %1305 = vmatprep.subr.mxu0 0.0
    %1306 = vmatpush1.msra.mxu0 0.0
    %1307 = vmatprep.subr.mxu0 0.0
    %1308 = vmatpush1.msra.mxu0 0.0
    %1309 = vmatprep.subr.mxu0 0.0
    %1310 = vmatpush1.msra.mxu0 0.0
    %1311 = vmatprep.subr.mxu0 0.0
    %1312 = vmatpush1.msra.mxu0 0.0
    %1313 = vmatprep.mubr.f32.mxu0 0.0
    %1314 = vmatmul.mubr.f32.gmra.mrb[0].mxu0 %v1034
    %v1315 = vpop.f32.mrb[0].mxu0
    %v1316 = vadd.f32 %v1000, %v1315
    %v1317 = vpop.f32.mrb[0].mxu0
    %v1318 = vadd.f32 %v1004, %v1317
    %1319 = vdwg.mxu0
    %1320 = vmatprep.subr.mxu0 %v862
    %1321 = vmatpush1.msra.mxu0 %v861
    %1322 = vmatprep.subr.mxu0 %v874
    %1323 = vmatpush1.msra.mxu0 %v873
    %1324 = vmatprep.subr.mxu0 %v886
    %1325 = vmatpush1.msra.mxu0 %v885
    %1326 = vmatprep.subr.mxu0 %v898
    %1327 = vmatpush1.msra.mxu0 %v897
    %1328 = vmatprep.subr.mxu0 0.0
    %1329 = vmatpush1.msra.mxu0 0.0
    %1330 = vmatprep.subr.mxu0 0.0
    %1331 = vmatpush1.msra.mxu0 0.0
    %1332 = vmatprep.subr.mxu0 0.0
    %1333 = vmatpush1.msra.mxu0 0.0
    %1334 = vmatprep.subr.mxu0 0.0
    %1335 = vmatpush1.msra.mxu0 0.0
    %1336 = vmatprep.subr.mxu0 0.0
    %1337 = vmatpush1.msra.mxu0 0.0
    %1338 = vmatprep.subr.mxu0 0.0
    %1339 = vmatpush1.msra.mxu0 0.0
    %1340 = vmatprep.subr.mxu0 0.0
    %1341 = vmatpush1.msra.mxu0 0.0
    %1342 = vmatprep.subr.mxu0 0.0
    %1343 = vmatpush1.msra.mxu0 0.0
    %1344 = vmatprep.subr.mxu0 0.0
    %1345 = vmatpush1.msra.mxu0 0.0
    %1346 = vmatprep.subr.mxu0 0.0
    %1347 = vmatpush1.msra.mxu0 0.0
    %1348 = vmatprep.subr.mxu0 0.0
    %1349 = vmatpush1.msra.mxu0 0.0
    %1350 = vmatprep.subr.mxu0 0.0
    %1351 = vmatpush1.msra.mxu0 0.0
    %1352 = vmatprep.subr.mxu0 0.0
    %1353 = vmatpush1.msra.mxu0 0.0
    %1354 = vmatprep.subr.mxu0 0.0
    %1355 = vmatpush1.msra.mxu0 0.0
    %1356 = vmatprep.subr.mxu0 0.0
    %1357 = vmatpush1.msra.mxu0 0.0
    %1358 = vmatprep.subr.mxu0 0.0
    %1359 = vmatpush1.msra.mxu0 0.0
    %1360 = vmatprep.subr.mxu0 0.0
    %1361 = vmatpush1.msra.mxu0 0.0
    %1362 = vmatprep.subr.mxu0 0.0
    %1363 = vmatpush1.msra.mxu0 0.0
    %1364 = vmatprep.subr.mxu0 0.0
    %1365 = vmatpush1.msra.mxu0 0.0
    %1366 = vmatprep.subr.mxu0 0.0
    %1367 = vmatpush1.msra.mxu0 0.0
    %1368 = vmatprep.subr.mxu0 0.0
    %1369 = vmatpush1.msra.mxu0 0.0
    %1370 = vmatprep.subr.mxu0 0.0
    %1371 = vmatpush1.msra.mxu0 0.0
    %1372 = vmatprep.subr.mxu0 0.0
    %1373 = vmatpush1.msra.mxu0 0.0
    %1374 = vmatprep.subr.mxu0 0.0
    %1375 = vmatpush1.msra.mxu0 0.0
    %1376 = vmatprep.subr.mxu0 0.0
    %1377 = vmatpush1.msra.mxu0 0.0
    %1378 = vmatprep.subr.mxu0 0.0
    %1379 = vmatpush1.msra.mxu0 0.0
    %1380 = vmatprep.subr.mxu0 0.0
    %1381 = vmatpush1.msra.mxu0 0.0
    %1382 = vmatprep.subr.mxu0 0.0
    %1383 = vmatpush1.msra.mxu0 0.0
    %1384 = vmatprep.mubr.f32.mxu0 0.0
    %1385 = vmatmul.mubr.f32.gmra.mrb[0].mxu0 %v1034
    %v1386 = vpop.f32.mrb[0].mxu0
    %v1387 = vadd.f32 %v1008, %v1386
    %v1388 = vpop.f32.mrb[0].mxu0
    %v1389 = vadd.f32 %v1012, %v1388
    %1390 = vdwg.mxu0
    %1391 = vmatprep.subr.mxu0 %v864
    %1392 = vmatpush1.msra.mxu0 %v863
    %1393 = vmatprep.subr.mxu0 %v876
    %1394 = vmatpush1.msra.mxu0 %v875
    %1395 = vmatprep.subr.mxu0 %v888
    %1396 = vmatpush1.msra.mxu0 %v887
    %1397 = vmatprep.subr.mxu0 %v900
    %1398 = vmatpush1.msra.mxu0 %v899
    %1399 = vmatprep.subr.mxu0 0.0
    %1400 = vmatpush1.msra.mxu0 0.0
    %1401 = vmatprep.subr.mxu0 0.0
    %1402 = vmatpush1.msra.mxu0 0.0
    %1403 = vmatprep.subr.mxu0 0.0
    %1404 = vmatpush1.msra.mxu0 0.0
    %1405 = vmatprep.subr.mxu0 0.0
    %1406 = vmatpush1.msra.mxu0 0.0
    %1407 = vmatprep.subr.mxu0 0.0
    %1408 = vmatpush1.msra.mxu0 0.0
    %1409 = vmatprep.subr.mxu0 0.0
    %1410 = vmatpush1.msra.mxu0 0.0
    %1411 = vmatprep.subr.mxu0 0.0
    %1412 = vmatpush1.msra.mxu0 0.0
    %1413 = vmatprep.subr.mxu0 0.0
    %1414 = vmatpush1.msra.mxu0 0.0
    %1415 = vmatprep.subr.mxu0 0.0
    %1416 = vmatpush1.msra.mxu0 0.0
    %1417 = vmatprep.subr.mxu0 0.0
    %1418 = vmatpush1.msra.mxu0 0.0
    %1419 = vmatprep.subr.mxu0 0.0
    %1420 = vmatpush1.msra.mxu0 0.0
    %1421 = vmatprep.subr.mxu0 0.0
    %1422 = vmatpush1.msra.mxu0 0.0
    %1423 = vmatprep.subr.mxu0 0.0
    %1424 = vmatpush1.msra.mxu0 0.0
    %1425 = vmatprep.subr.mxu0 0.0
    %1426 = vmatpush1.msra.mxu0 0.0
    %1427 = vmatprep.subr.mxu0 0.0
    %1428 = vmatpush1.msra.mxu0 0.0
    %1429 = vmatprep.subr.mxu0 0.0
    %1430 = vmatpush1.msra.mxu0 0.0
    %1431 = vmatprep.subr.mxu0 0.0
    %1432 = vmatpush1.msra.mxu0 0.0
    %1433 = vmatprep.subr.mxu0 0.0
    %1434 = vmatpush1.msra.mxu0 0.0
    %1435 = vmatprep.subr.mxu0 0.0
    %1436 = vmatpush1.msra.mxu0 0.0
    %1437 = vmatprep.subr.mxu0 0.0
    %1438 = vmatpush1.msra.mxu0 0.0
    %1439 = vmatprep.subr.mxu0 0.0
    %1440 = vmatpush1.msra.mxu0 0.0
    %1441 = vmatprep.subr.mxu0 0.0
    %1442 = vmatpush1.msra.mxu0 0.0
    %1443 = vmatprep.subr.mxu0 0.0
    %1444 = vmatpush1.msra.mxu0 0.0
    %1445 = vmatprep.subr.mxu0 0.0
    %1446 = vmatpush1.msra.mxu0 0.0
    %1447 = vmatprep.subr.mxu0 0.0
    %1448 = vmatpush1.msra.mxu0 0.0
    %1449 = vmatprep.subr.mxu0 0.0
    %1450 = vmatpush1.msra.mxu0 0.0
    %1451 = vmatprep.subr.mxu0 0.0
    %1452 = vmatpush1.msra.mxu0 0.0
    %1453 = vmatprep.subr.mxu0 0.0
    %1454 = vmatpush1.msra.mxu0 0.0
    %1455 = vmatprep.mubr.f32.mxu0 0.0
    %1456 = vmatmul.mubr.f32.gmra.mrb[0].mxu0 %v1034
    %v1457 = vpop.f32.mrb[0].mxu0
    %v1458 = vadd.f32 %v1016, %v1457
    %v1459 = vpop.f32.mrb[0].mxu0
    %v1460 = vadd.f32 %v1020, %v1459
    %1461 = vdwg.mxu0
    %v1462 = vmul.f32 %v1103, %v1245
    %v1463 = vmul.f32 %v1105, %v1247
    %v1464 = vmul.f32 %v1174, %v1316
    %v1465 = vmul.f32 %v1176, %v1318
    %v1466 = vadd.f32 %v1462, %v1463
    %v1467 = vadd.f32 %v1466, %v1464
    %v1468 = vadd.f32 %v1467, %v1465
    %v1469 = vrot.slane %v1468, 4
    %v1470 = vmax.f32 %v1468, %v1469
    %v1471 = vrot.slane %v1470, 2
    %v1472 = vmax.f32 %v1470, %v1471
    %v1473 = vrot.slane %v1472, 1
    %v1474 = vmax.f32 %v1472, %v1473
    %v1475 = vsub.f32 %v1468, %v1474
    %v1476 = vmul.f32 %v1475, 1.442695
    %v1477 = vpow.pop %v1476
    %v1478 = vrot.slane %v1477, 4
    %v1479 = vadd.f32 %v1477, %v1478
    %v1480 = vrot.slane %v1479, 2
    %v1481 = vadd.f32 %v1479, %v1480
    %v1482 = vrot.slane %v1481, 1
    %v1483 = vadd.f32 %v1481, %v1482
    %v1484 = vrcp.pop %v1483
    %v1485 = vmul.f32 %v1477, %v1484
    %v1486 = vmul.f32 %v1485, %v1387
    %v1487 = vmul.f32 %v1485, %v1389
    %v1488 = vmul.f32 %v1485, %v1458
    %v1489 = vmul.f32 %v1485, %v1460
    %v1491 = vlaneseq
    %v1492 = vshrl.u32 %v1491, 7
    %v1493 = vsub.s32 0, %v1492
    %v1494 = vrot.slane %v970, %v1493
    %1496 = vmatprep.subr.mxu0 0.0
    %1497 = vmatpush1.msra.mxu0 %v905
    %1498 = vmatprep.subr.mxu0 0.0
    %1499 = vmatpush1.msra.mxu0 %v906
    %1500 = vmatprep.subr.mxu0 0.0
    %1501 = vmatpush1.msra.mxu0 %v907
    %1502 = vmatprep.subr.mxu0 0.0
    %1503 = vmatpush1.msra.mxu0 %v908
    %1504 = vmatprep.subr.mxu0 0.0
    %1505 = vmatpush1.msra.mxu0 %v909
    %1506 = vmatprep.subr.mxu0 0.0
    %1507 = vmatpush1.msra.mxu0 %v910
    %1508 = vmatprep.subr.mxu0 0.0
    %1509 = vmatpush1.msra.mxu0 %v911
    %1510 = vmatprep.subr.mxu0 0.0
    %1511 = vmatpush1.msra.mxu0 %v912
    %1512 = vmatprep.subr.mxu0 0.0
    %1513 = vmatpush1.msra.mxu0 %v913
    %1514 = vmatprep.subr.mxu0 0.0
    %1515 = vmatpush1.msra.mxu0 %v914
    %1516 = vmatprep.subr.mxu0 0.0
    %1517 = vmatpush1.msra.mxu0 %v915
    %1518 = vmatprep.subr.mxu0 0.0
    %1519 = vmatpush1.msra.mxu0 %v916
    %1520 = vmatprep.subr.mxu0 0.0
    %1521 = vmatpush1.msra.mxu0 %v917
    %1522 = vmatprep.subr.mxu0 0.0
    %1523 = vmatpush1.msra.mxu0 %v918
    %1524 = vmatprep.subr.mxu0 0.0
    %1525 = vmatpush1.msra.mxu0 %v919
    %1526 = vmatprep.subr.mxu0 0.0
    %1527 = vmatpush1.msra.mxu0 %v920
    %1528 = vmatprep.subr.mxu0 0.0
    %1529 = vmatpush1.msra.mxu0 %v921
    %1530 = vmatprep.subr.mxu0 0.0
    %1531 = vmatpush1.msra.mxu0 %v922
    %1532 = vmatprep.subr.mxu0 0.0
    %1533 = vmatpush1.msra.mxu0 %v923
    %1534 = vmatprep.subr.mxu0 0.0
    %1535 = vmatpush1.msra.mxu0 %v924
    %1536 = vmatprep.subr.mxu0 0.0
    %1537 = vmatpush1.msra.mxu0 %v925
    %1538 = vmatprep.subr.mxu0 0.0
    %1539 = vmatpush1.msra.mxu0 %v926
    %1540 = vmatprep.subr.mxu0 0.0
    %1541 = vmatpush1.msra.mxu0 %v927
    %1542 = vmatprep.subr.mxu0 0.0
    %1543 = vmatpush1.msra.mxu0 %v928
    %1544 = vmatprep.subr.mxu0 0.0
    %1545 = vmatpush1.msra.mxu0 %v929
    %1546 = vmatprep.subr.mxu0 0.0
    %1547 = vmatpush1.msra.mxu0 %v930
    %1548 = vmatprep.subr.mxu0 0.0
    %1549 = vmatpush1.msra.mxu0 %v931
    %1550 = vmatprep.subr.mxu0 0.0
    %1551 = vmatpush1.msra.mxu0 %v932
    %1552 = vmatprep.subr.mxu0 0.0
    %1553 = vmatpush1.msra.mxu0 %v933
    %1554 = vmatprep.subr.mxu0 0.0
    %1555 = vmatpush1.msra.mxu0 %v934
    %1556 = vmatprep.subr.mxu0 0.0
    %1557 = vmatpush1.msra.mxu0 %v935
    %1558 = vmatprep.subr.mxu0 0.0
    %1559 = vmatpush1.msra.mxu0 %v936
    %1560 = vmatprep.mubr.f32.mxu0 %v1487
    %1561 = vmatmul.mubr.f32.gmra.mrb[0].mxu0 %v1486
    %v1562 = vpop.f32.mrb[0].mxu0
    %v1563 = vadd.f32 %v1494, %v1562
    %v1564 = vpop.f32.mrb[0].mxu0
    %1565 = vdwg.mxu0
    %1566 = vmatprep.subr.mxu0 0.0
    %1567 = vmatpush1.msra.mxu0 %v937
    %1568 = vmatprep.subr.mxu0 0.0
    %1569 = vmatpush1.msra.mxu0 %v938
    %1570 = vmatprep.subr.mxu0 0.0
    %1571 = vmatpush1.msra.mxu0 %v939
    %1572 = vmatprep.subr.mxu0 0.0
    %1573 = vmatpush1.msra.mxu0 %v940
    %1574 = vmatprep.subr.mxu0 0.0
    %1575 = vmatpush1.msra.mxu0 %v941
    %1576 = vmatprep.subr.mxu0 0.0
    %1577 = vmatpush1.msra.mxu0 %v942
    %1578 = vmatprep.subr.mxu0 0.0
    %1579 = vmatpush1.msra.mxu0 %v943
    %1580 = vmatprep.subr.mxu0 0.0
    %1581 = vmatpush1.msra.mxu0 %v944
    %1582 = vmatprep.subr.mxu0 0.0
    %1583 = vmatpush1.msra.mxu0 %v945
    %1584 = vmatprep.subr.mxu0 0.0
    %1585 = vmatpush1.msra.mxu0 %v946
    %1586 = vmatprep.subr.mxu0 0.0
    %1587 = vmatpush1.msra.mxu0 %v947
    %1588 = vmatprep.subr.mxu0 0.0
    %1589 = vmatpush1.msra.mxu0 %v948
    %1590 = vmatprep.subr.mxu0 0.0
    %1591 = vmatpush1.msra.mxu0 %v949
    %1592 = vmatprep.subr.mxu0 0.0
    %1593 = vmatpush1.msra.mxu0 %v950
    %1594 = vmatprep.subr.mxu0 0.0
    %1595 = vmatpush1.msra.mxu0 %v951
    %1596 = vmatprep.subr.mxu0 0.0
    %1597 = vmatpush1.msra.mxu0 %v952
    %1598 = vmatprep.subr.mxu0 0.0
    %1599 = vmatpush1.msra.mxu0 %v953
    %1600 = vmatprep.subr.mxu0 0.0
    %1601 = vmatpush1.msra.mxu0 %v954
    %1602 = vmatprep.subr.mxu0 0.0
    %1603 = vmatpush1.msra.mxu0 %v955
    %1604 = vmatprep.subr.mxu0 0.0
    %1605 = vmatpush1.msra.mxu0 %v956
    %1606 = vmatprep.subr.mxu0 0.0
    %1607 = vmatpush1.msra.mxu0 %v957
    %1608 = vmatprep.subr.mxu0 0.0
    %1609 = vmatpush1.msra.mxu0 %v958
    %1610 = vmatprep.subr.mxu0 0.0
    %1611 = vmatpush1.msra.mxu0 %v959
    %1612 = vmatprep.subr.mxu0 0.0
    %1613 = vmatpush1.msra.mxu0 %v960
    %1614 = vmatprep.subr.mxu0 0.0
    %1615 = vmatpush1.msra.mxu0 %v961
    %1616 = vmatprep.subr.mxu0 0.0
    %1617 = vmatpush1.msra.mxu0 %v962
    %1618 = vmatprep.subr.mxu0 0.0
    %1619 = vmatpush1.msra.mxu0 %v963
    %1620 = vmatprep.subr.mxu0 0.0
    %1621 = vmatpush1.msra.mxu0 %v964
    %1622 = vmatprep.subr.mxu0 0.0
    %1623 = vmatpush1.msra.mxu0 %v965
    %1624 = vmatprep.subr.mxu0 0.0
    %1625 = vmatpush1.msra.mxu0 %v966
    %1626 = vmatprep.subr.mxu0 0.0
    %1627 = vmatpush1.msra.mxu0 %v967
    %1628 = vmatprep.subr.mxu0 0.0
    %1629 = vmatpush1.msra.mxu0 %v968
    %1630 = vmatprep.mubr.f32.mxu0 %v1489
    %1631 = vmatmul.mubr.f32.gmra.mrb[0].mxu0 %v1488
    %v1632 = vpop.f32.mrb[0].mxu0
    %v1633 = vadd.f32 %v1563, %v1632
    %v1634 = vpop.f32.mrb[0].mxu0
    %1635 = vdwg.mxu0
    %v1636 = vsel %vm31, %v1633, 0.0
    %1637 = vadd.xlane.f32.xlu0 %v1636
    %v1638 = vpop.xlane.xlu0 %1637
    %v1639 = vmul.f32 %v1638, %v35
    %v1640 = vsub.f32 %v1633, %v1639
    %v1641 = vmul.f32 %v1640, %v1640
    %v1642 = vsel %vm31, %v1641, 0.0
    %1643 = vadd.xlane.f32.xlu0 %v1642
    %v1644 = vpop.xlane.xlu0 %1643
    %v1645 = vmul.f32 %v1644, 0.032258064
    %v1646 = vrsqrt.pop %v1645
    %v1647 = vmul.f32 %v1645, %v1646
    %vm1648 = vcmp.eq.f32.partialorder %v1645, inf
    %v1649 = vsel %vm1648, %v1645, %v1647
    %vm1650 = vcmp.eq.f32.partialorder %v1645, 0.0
    %v1651 = vand.u32 %v1645, 2147483648
    %v1652 = vsel %vm1650, %v1651, %v1649
    %v1653 = vadd.f32 %v1652, 1e-06
    %v1654 = vrcp.pop %v1653
    %v1655 = vmul.f32 %v1640, %v1654
    %v1656 = vld [vmem:[%s6] sm:$0xff]
    %v1657 = vld [vmem:[%s6 + $0x8] sm:$0xff]
    %v1658 = vld [vmem:[%s6 + $0x10] sm:$0xff]
    %v1659 = vld [vmem:[%s6 + $0x18] sm:$0xff]
    %v1660 = vld [vmem:[%s7] sm:$0x1]
    %v1662 = vlaneseq
    %v1663 = vshrl.u32 %v1662, 7
    %v1664 = vsub.s32 0, %v1663
    %v1665 = vrot.slane %v1660, %v1664
    %v1668 = vsel %vm31, %v1655, 0
    %1670 = vmatprep.subr.mxu0 0.0
    %1671 = vmatpush1.msra.mxu0 %v1656
    %1672 = vmatprep.subr.mxu0 0.0
    %1673 = vmatpush1.msra.mxu0 %v1657
    %1674 = vmatprep.subr.mxu0 0.0
    %1675 = vmatpush1.msra.mxu0 %v1658
    %1676 = vmatprep.subr.mxu0 0.0
    %1677 = vmatpush1.msra.mxu0 %v1659
    %1678 = vmatprep.subr.mxu0 0.0
    %1679 = vmatpush1.msra.mxu0 0.0
    %1680 = vmatprep.subr.mxu0 0.0
    %1681 = vmatpush1.msra.mxu0 0.0
    %1682 = vmatprep.subr.mxu0 0.0
    %1683 = vmatpush1.msra.mxu0 0.0
    %1684 = vmatprep.subr.mxu0 0.0
    %1685 = vmatpush1.msra.mxu0 0.0
    %1686 = vmatprep.subr.mxu0 0.0
    %1687 = vmatpush1.msra.mxu0 0.0
    %1688 = vmatprep.subr.mxu0 0.0
    %1689 = vmatpush1.msra.mxu0 0.0
    %1690 = vmatprep.subr.mxu0 0.0
    %1691 = vmatpush1.msra.mxu0 0.0
    %1692 = vmatprep.subr.mxu0 0.0
    %1693 = vmatpush1.msra.mxu0 0.0
    %1694 = vmatprep.subr.mxu0 0.0
    %1695 = vmatpush1.msra.mxu0 0.0
    %1696 = vmatprep.subr.mxu0 0.0
    %1697 = vmatpush1.msra.mxu0 0.0
    %1698 = vmatprep.subr.mxu0 0.0
    %1699 = vmatpush1.msra.mxu0 0.0
    %1700 = vmatprep.subr.mxu0 0.0
    %1701 = vmatpush1.msra.mxu0 0.0
    %1702 = vmatprep.subr.mxu0 0.0
    %1703 = vmatpush1.msra.mxu0 0.0
    %1704 = vmatprep.subr.mxu0 0.0
    %1705 = vmatpush1.msra.mxu0 0.0
    %1706 = vmatprep.subr.mxu0 0.0
    %1707 = vmatpush1.msra.mxu0 0.0
    %1708 = vmatprep.subr.mxu0 0.0
    %1709 = vmatpush1.msra.mxu0 0.0
    %1710 = vmatprep.subr.mxu0 0.0
    %1711 = vmatpush1.msra.mxu0 0.0
    %1712 = vmatprep.subr.mxu0 0.0
    %1713 = vmatpush1.msra.mxu0 0.0
    %1714 = vmatprep.subr.mxu0 0.0
    %1715 = vmatpush1.msra.mxu0 0.0
    %1716 = vmatprep.subr.mxu0 0.0
    %1717 = vmatpush1.msra.mxu0 0.0
    %1718 = vmatprep.subr.mxu0 0.0
    %1719 = vmatpush1.msra.mxu0 0.0
    %1720 = vmatprep.subr.mxu0 0.0
    %1721 = vmatpush1.msra.mxu0 0.0
    %1722 = vmatprep.subr.mxu0 0.0
    %1723 = vmatpush1.msra.mxu0 0.0
    %1724 = vmatprep.subr.mxu0 0.0
    %1725 = vmatpush1.msra.mxu0 0.0
    %1726 = vmatprep.subr.mxu0 0.0
    %1727 = vmatpush1.msra.mxu0 0.0
    %1728 = vmatprep.subr.mxu0 0.0
    %1729 = vmatpush1.msra.mxu0 0.0
    %1730 = vmatprep.subr.mxu0 0.0
    %1731 = vmatpush1.msra.mxu0 0.0
    %1732 = vmatprep.subr.mxu0 0.0
    %1733 = vmatpush1.msra.mxu0 0.0
    %1734 = vmatprep.mubr.f32.mxu0 0.0
    %1735 = vmatmul.mubr.f32.gmra.mrb[0].mxu0 %v1668
    %v1736 = vpop.f32.mrb[0].mxu0
    %v1737 = vadd.f32 %v1665, %v1736
    %v1738 = vpop.f32.mrb[0].mxu0
    %1739 = vdwg.mxu0
    %vm1740 = vcmask 64512
    %v1741 = vsel %vm1740, %v1737, -inf
    %1742 = vmax.xlane.f32.xlu0 %v1741
    %v1743 = vpop.xlane.xlu0 %1742
    %v1744 = vsub.f32 %v1737, %v1743
    %v1745 = vmul.f32 %v1744, 1.442695
    %v1746 = vpow.pop %v1745
    %v1747 = vsel %vm1740, %v1746, 0.0
    %1748 = vadd.xlane.f32.xlu0 %v1747
    %v1749 = vpop.xlane.xlu0 %1748
    %v1750 = vrcp.pop %v1749
    %v1751 = vmul.f32 %v1746, %v1750
    %1752 = vst.msk [vmem:[#allocation2] sm:$0xff] %vm1740, %v1751
    // Predicated region
    $region34: #{nlp_classify_forward.1} parent=1 // pred_check
      _
    $region35: #{nlp_classify_forward.1} parent=1 // pred_check_branch
      %1754 = sbr.rel (0) target = $region37
    $region36: #{nlp_classify_forward.1} parent=1 // pred_region
      %s1756 = ssub.s32 128, 128
      %1757 = vsyncadd [#allocation3], %s1756
      %s1759 = sshll.u32 [#allocation2], 4
      %s1760 = int_to_ptr.vmem [resolvable:$true] %s1759
      %1762 = dma.vmem_to_hbm [thread:$0]  %s1760, 128, %s8, [#allocation3]
    $region37: #{nlp_classify_forward.1} parent=1 // pred_fallthru
      _
    // Predicated region
    $region38: #{nlp_classify_forward.1} parent=1 // pred_check
      _
    $region39: #{nlp_classify_forward.1} parent=1 // pred_check_branch
      %1764 = sbr.rel (0) target = $region41
    $region40: #{nlp_classify_forward.1} parent=1 // pred_region
      %1765 = dma.done [#allocation3], 128
    $region41: #{nlp_classify_forward.1} parent=1 // pred_fallthru
      _
    %1766 = vsyncpa [#allocation3], 1

</llo_original>
